<compile_context>
chip_gen: v6e
topology: v6e:2x2x1
jax: 0.10.0
libtpu: 0.0.40
codegen_flags: <defaults>
</compile_context>

<pallas_src>
import jax
import jax.numpy as jnp
from jax.experimental import pallas as pl
from jax.experimental.pallas import tpu as pltpu

HIDDEN = 32               # GCLSTM hidden size (fixed to 32 in RecurrentGCN.__init__)
GATES = 4 * HIDDEN        # 128 gate channels -> one full sublane-dense block
DEFAULT_NODE_TILE = 4096  # lanes (nodes) per grid step; sweep 2048..8192


def _round_up(v, m):
    return (v + m - 1) // m * m


def _choose_node_tile(n, node_tile):
    """Multiple of 128, no bigger than needed, and >=2 tiles when possible (v7x)."""
    cap_full = _round_up(n, 128)
    cap_half = max(128, _round_up((n + 1) // 2, 128))
    return max(128, min(_round_up(node_tile, 128), cap_full, cap_half))


def _gclstm_rollout_kernel(xT_ref, h0_ref, c0_ref,
                           wxT_ref, whT_ref, bT_ref, wcT_ref, wlin_ref, blin_ref,
                           yT_ref, hT_ref, cT_ref):
    """Fused GCLSTM(K=1) + Linear(32->1) for one node tile, one time step.

    Grid = (node_tiles, T).  hT_ref / cT_ref have a constant block index along
    the time axis, so they stay resident in VMEM and act as the recurrent carry.
    """
    t = pl.program_id(1)

    @pl.when(t == 0)
    def _():
        hT_ref[...] = h0_ref[...].astype(jnp.float32)
        cT_ref[...] = c0_ref[...].astype(jnp.float32)

    h = hT_ref[...]                       # (32, TN) f32 carried state
    c = cT_ref[...]

    wx = wxT_ref[...]                     # (128, F)  resident (maybe bf16)
    wh = whT_ref[...]                     # (128, 32) resident (maybe bf16)

    # gates^T : (128, TN) = Wx^T @ X_t^T + Wh^T @ H^T + b ; both matmuls on MXU
    # with M=128 and a lane-dense result; MXU inputs may be bf16, accum is f32.
    gates = jnp.dot(wx, xT_ref[0].astype(wx.dtype),
                    preferred_element_type=jnp.float32)
    gates = gates + jnp.dot(wh, h.astype(wh.dtype),
                            preferred_element_type=jnp.float32)
    gates = gates + bT_ref[...]           # (128, 1) broadcast over node lanes

    # Gate split = static sublane slices (multiples of 8) — no relayout.
    wc = wcT_ref[...]                     # (96, 1) peephole weights [i; f; o]
    i_g = jax.nn.sigmoid(gates[0 * HIDDEN:1 * HIDDEN, :]
                         + wc[0 * HIDDEN:1 * HIDDEN, :] * c)
    f_g = jax.nn.sigmoid(gates[1 * HIDDEN:2 * HIDDEN, :]
                         + wc[1 * HIDDEN:2 * HIDDEN, :] * c)
    g_g = jnp.tanh(gates[2 * HIDDEN:3 * HIDDEN, :])
    c_new = f_g * c + i_g * g_g
    o_g = jax.nn.sigmoid(gates[3 * HIDDEN:4 * HIDDEN, :]
                         + wc[2 * HIDDEN:3 * HIDDEN, :] * c_new)
    h_new = o_g * jnp.tanh(c_new)

    cT_ref[...] = c_new                   # carried state / final output
    hT_ref[...] = h_new

    # Linear(32 -> 1) as VPU multiply + sublane sum (no M=1 MXU pass).
    yT_ref[0, :, :] = (jnp.sum(h_new * wlin_ref[...], axis=0, keepdims=True)
                       + blin_ref[0, 0])


def recurrent_gcn_rollout(xT_seq, edge_index, edge_weight, hT, cT, params,
                          *, node_tile=DEFAULT_NODE_TILE, vmem_limit_bytes=None):
    """Multi-step rollout with the time loop inside the kernel.

    Args (all channel-major; x_pt.T etc. relative to the PyTorch layout):
      xT_seq: (T, F, N)  node features per step.
      edge_index, edge_weight: unused for K=1 (kept for API fidelity).
      hT, cT: (32, N) initial hidden / cell state (kept f32).
      params: dict from init_params (channel-major).

    Returns: (yT_seq (T, 1, N), hT_new (32, N), cT_new (32, N)), all f32.
    """
    del edge_index, edge_weight  # ChebConv with K=1 never uses the graph.

    seq_len, f, n = xT_seq.shape
    tile = _choose_node_tile(n, node_tile)
    grid = (pl.cdiv(n, tile), seq_len)   # node tiles "parallel", time "arbitrary"

    in_specs = [
        pl.BlockSpec((1, f, tile), lambda i, t: (t, 0, i)),        # X_t^T tile
        pl.BlockSpec((HIDDEN, tile), lambda i, t: (0, i)),         # H0^T tile
        pl.BlockSpec((HIDDEN, tile), lambda i, t: (0, i)),         # C0^T tile
        pl.BlockSpec((GATES, f), lambda i, t: (0, 0)),             # Wx^T (resident)
        pl.BlockSpec((GATES, HIDDEN), lambda i, t: (0, 0)),        # Wh^T (resident)
        pl.BlockSpec((GATES, 1), lambda i, t: (0, 0)),             # gate bias
        pl.BlockSpec((3 * HIDDEN, 1), lambda i, t: (0, 0)),        # peephole w_c
        pl.BlockSpec((HIDDEN, 1), lambda i, t: (0, 0)),            # W_lin column
        pl.BlockSpec(memory_space=pltpu.MemorySpace.SMEM),         # b_lin scalar
    ]
    out_specs = (
        pl.BlockSpec((1, 1, tile), lambda i, t: (t, 0, i)),        # y_t^T
        pl.BlockSpec((HIDDEN, tile), lambda i, t: (0, i)),         # H'^T (carry)
        pl.BlockSpec((HIDDEN, tile), lambda i, t: (0, i)),         # C'^T (carry)
    )
    out_shapes = (
        jax.ShapeDtypeStruct((seq_len, 1, n), jnp.float32),
        jax.ShapeDtypeStruct((HIDDEN, n), jnp.float32),
        jax.ShapeDtypeStruct((HIDDEN, n), jnp.float32),
    )

    return pl.pallas_call(
        _gclstm_rollout_kernel,
        out_shape=out_shapes,
        grid_spec=pl.GridSpec(grid=grid, in_specs=in_specs, out_specs=out_specs),
        compiler_params=pltpu.CompilerParams(
            dimension_semantics=("parallel", "arbitrary"),
            vmem_limit_bytes=vmem_limit_bytes),
    )(xT_seq, hT, cT, params["wxT"], params["whT"], params["bT"],
      params["wcT"], params["wlin"], params["blin"])


def recurrent_gcn_forward(xT, edge_index, edge_weight, hT, cT, params,
                          *, node_tile=DEFAULT_NODE_TILE, vmem_limit_bytes=None):
    """Single-step forward matching RecurrentGCN.forward (channel-major arrays).

    xT: (F, N); hT, cT: (32, N).  Returns (y^T (1, N), H'^T (32, N), C'^T (32, N)).
    """
    yT_seq, hT_new, cT_new = recurrent_gcn_rollout(
        xT[None], edge_index, edge_weight, hT, cT, params,
        node_tile=node_tile, vmem_limit_bytes=vmem_limit_bytes)
    return yT_seq[0], hT_new, cT_new


def init_params(key, node_features, *, dtype=jnp.float32):
    """Channel-major params matching the shapes of RecurrentGCN.__init__.

    `dtype` controls HBM storage of the two big matmul weights (bf16 halves
    DMA traffic on v6e/v7x); biases / peepholes / linear head stay f32.
    """
    ks = jax.random.split(key, 13)

    def glorot(k, shape):
        fan_in, fan_out = shape
        lim = (6.0 / (fan_in + fan_out)) ** 0.5
        return jax.random.uniform(k, shape, jnp.float32, -lim, lim)

    # GCLSTM input weights W_{i,f,c,o}: (F, HIDDEN) each.
    w = [glorot(ks[i], (node_features, HIDDEN)) for i in range(4)]
    # ChebConv(K=1) weights Theta_{i,f,c,o}: (HIDDEN, HIDDEN) each (H @ Theta).
    th = [glorot(ks[4 + i], (HIDDEN, HIDDEN)) for i in range(4)]
    # Peephole weights w_c_{i,f,o}: (1, HIDDEN) each.
    wc = [glorot(ks[8 + i], (1, HIDDEN)) for i in range(3)]

    wx = jnp.concatenate(w, axis=1)      # (F, 128)
    wh = jnp.concatenate(th, axis=1)     # (32, 128)
    wc = jnp.concatenate(wc, axis=1)     # (1, 96)

    # Gate biases + ChebConv biases are zero-init in torch; keep zero (combined).
    b = jnp.zeros((GATES, 1), jnp.float32)

    # Linear(32, 1): torch default uniform(-1/sqrt(32), 1/sqrt(32)).
    lim = 1.0 / (HIDDEN ** 0.5)
    w_lin = jax.random.uniform(ks[11], (1, HIDDEN), jnp.float32, -lim, lim)
    b_lin = jax.random.uniform(ks[12], (1, 1), jnp.float32, -lim, lim)

    return {
        "wxT": wx.T.astype(dtype),       # (128, F)   channel-major
        "whT": wh.T.astype(dtype),       # (128, 32)
        "bT": b,                         # (128, 1)
        "wcT": wc.T,                     # (96, 1)  [w_c_i; w_c_f; w_c_o]
        "wlin": w_lin.T,                 # (32, 1)  column for VPU mul + sum
        "blin": b_lin,                   # (1, 1) scalar -> SMEM
    }


# ----------------------------- pure-JAX reference -----------------------------

def _reference_step(xT, hT, cT, params):
    gates = (params["wxT"].astype(jnp.float32) @ xT.astype(jnp.float32)
             + params["whT"].astype(jnp.float32) @ hT + params["bT"])
    wc = params["wcT"]
    i_g = jax.nn.sigmoid(gates[0 * HIDDEN:1 * HIDDEN] + wc[0 * HIDDEN:1 * HIDDEN] * cT)
    f_g = jax.nn.sigmoid(gates[1 * HIDDEN:2 * HIDDEN] + wc[1 * HIDDEN:2 * HIDDEN] * cT)
    g_g = jnp.tanh(gates[2 * HIDDEN:3 * HIDDEN])
    c_new = f_g * cT + i_g * g_g
    o_g = jax.nn.sigmoid(gates[3 * HIDDEN:4 * HIDDEN] + wc[2 * HIDDEN:3 * HIDDEN] * c_new)
    h_new = o_g * jnp.tanh(c_new)
    y = jnp.sum(h_new * params["wlin"], axis=0, keepdims=True) + params["blin"][0, 0]
    return y, h_new, c_new


def _reference_rollout(xT_seq, hT, cT, params):
    ys = []
    for t in range(xT_seq.shape[0]):
        y, hT, cT = _reference_step(xT_seq[t], hT, cT, params)
        ys.append(y[None])
    return jnp.concatenate(ys, axis=0), hT, cT


if __name__ == "__main__":
    key = jax.random.PRNGKey(0)
    k_param, k_x, k_h, k_c, k_seq = jax.random.split(key, 5)

    num_nodes = 200          # not a multiple of 128 -> exercises the masked tail block
    node_features = 8
    seq_len = 6

    params = init_params(k_param, node_features)

    # Channel-major storage end-to-end (channels on sublanes, nodes on lanes).
    xT = jax.random.normal(k_x, (node_features, num_nodes), jnp.float32)
    hT0 = jax.random.normal(k_h, (HIDDEN, num_nodes), jnp.float32)
    cT0 = jax.random.normal(k_c, (HIDDEN, num_nodes), jnp.float32)
    xT_seq = jax.random.normal(k_seq, (seq_len, node_features, num_nodes), jnp.float32)

    # Simple ring graph (unused with K=1, kept for signature fidelity).
    src = jnp.arange(num_nodes, dtype=jnp.int32)
    dst = (src + 1) % num_nodes
    edge_index = jnp.stack([src, dst], axis=0)
    edge_weight = jnp.ones((num_nodes,), jnp.float32)

    # 1) Single-step forward (== RecurrentGCN.forward).
    y, h1, c1 = recurrent_gcn_forward(xT, edge_index, edge_weight, hT0, cT0, params)
    jax.block_until_ready((y, h1, c1))
    y_ref, h_ref, c_ref = _reference_step(xT, hT0, cT0, params)
    assert y.shape == (1, num_nodes)
    assert h1.shape == (HIDDEN, num_nodes) and c1.shape == (HIDDEN, num_nodes)
    assert jnp.allclose(y, y_ref, atol=1e-4, rtol=1e-4)
    assert jnp.allclose(h1, h_ref, atol=1e-4, rtol=1e-4)
    assert jnp.allclose(c1, c_ref, atol=1e-4, rtol=1e-4)

    # 2) Fused multi-step rollout (time loop inside the kernel, state in VMEM).
    ys, hT_T, cT_T = recurrent_gcn_rollout(xT_seq, edge_index, edge_weight,
                                           hT0, cT0, params)
    jax.block_until_ready((ys, hT_T, cT_T))
    ys_ref, hT_ref, cT_ref = _reference_rollout(xT_seq, hT0, cT0, params)
    assert ys.shape == (seq_len, 1, num_nodes)
    assert jnp.allclose(ys, ys_ref, atol=1e-3, rtol=1e-3)
    assert jnp.allclose(hT_T, hT_ref, atol=1e-3, rtol=1e-3)
    assert jnp.allclose(cT_T, cT_ref, atol=1e-3, rtol=1e-3)

    # 3) bf16 HBM storage for x / Wx^T / Wh^T (v6e/v7x traffic win); state stays f32.
    params_bf16 = init_params(k_param, node_features, dtype=jnp.bfloat16)
    y_b, h_b, c_b = recurrent_gcn_forward(xT.astype(jnp.bfloat16), edge_index,
                                          edge_weight, hT0, cT0, params_bf16)
    jax.block_until_ready((y_b, h_b, c_b))
    assert jnp.all(jnp.isfinite(h_b)) and jnp.all(jnp.isfinite(c_b))
    assert jnp.allclose(y_b, y_ref, atol=1e-1)

    print("KERNEL_OK")
</pallas_src>

<mosaic_0001>
module attributes {stable_mosaic.version = 11 : i64} {
  func.func @_gclstm_rollout_kernel(%arg0: i32, %arg1: i32, %arg2: memref<1x8x128xf32, #tpu.memory_space<vmem>>, %arg3: memref<32x128xf32, #tpu.memory_space<vmem>>, %arg4: memref<32x128xf32, #tpu.memory_space<vmem>>, %arg5: memref<128x8xf32, #tpu.memory_space<vmem>>, %arg6: memref<128x32xf32, #tpu.memory_space<vmem>>, %arg7: memref<128x1xf32, #tpu.memory_space<vmem>>, %arg8: memref<96x1xf32, #tpu.memory_space<vmem>>, %arg9: memref<32x1xf32, #tpu.memory_space<vmem>>, %arg10: memref<1x1xf32, #tpu.memory_space<smem>>, %arg11: memref<1x1x128xf32, #tpu.memory_space<vmem>>, %arg12: memref<32x128xf32, #tpu.memory_space<vmem>>, %arg13: memref<32x128xf32, #tpu.memory_space<vmem>>) attributes {dimension_semantics = [#tpu.dimension_semantics<parallel>, #tpu.dimension_semantics<arbitrary>], iteration_bounds = array<i64: 2, 1>, scalar_prefetch = 0 : i64, scratch_operands = 0 : i64, tpu.core_type = #tpu.core_type<tc>, window_params = [{transform_indices = @transform_0, window_bounds = array<i64: 1, 8, 128>}, {transform_indices = @transform_1, window_bounds = array<i64: 32, 128>}, {transform_indices = @transform_2, window_bounds = array<i64: 32, 128>}, {pipeline_mode = #tpu.pipeline_mode<synchronous>, transform_indices = @transform_3, window_bounds = array<i64: 128, 8>}, {pipeline_mode = #tpu.pipeline_mode<synchronous>, transform_indices = @transform_4, window_bounds = array<i64: 128, 32>}, {pipeline_mode = #tpu.pipeline_mode<synchronous>, transform_indices = @transform_5, window_bounds = array<i64: 128, 1>}, {pipeline_mode = #tpu.pipeline_mode<synchronous>, transform_indices = @transform_6, window_bounds = array<i64: 96, 1>}, {pipeline_mode = #tpu.pipeline_mode<synchronous>, transform_indices = @transform_7, window_bounds = array<i64: 32, 1>}, {transform_indices = @transform_8, window_bounds = array<i64: 1, 1>}, {transform_indices = @transform_9, window_bounds = array<i64: 1, 1, 128>}, {transform_indices = @transform_10, window_bounds = array<i64: 32, 128>}, {transform_indices = @transform_11, window_bounds = array<i64: 32, 128>}]} {
    %c0_i32 = arith.constant 0 : i32
    %0 = arith.cmpi eq, %arg1, %c0_i32 : i32
    %1 = arith.extui %0 : i1 to i32
    %c0_i32_0 = arith.constant 0 : i32
    %2 = arith.cmpi ne, %1, %c0_i32_0 : i32
    scf.if %2 {
      %c0_31 = arith.constant 0 : index
      %c0_32 = arith.constant 0 : index
      %66 = vector.load %arg3[%c0_31, %c0_32] : memref<32x128xf32, #tpu.memory_space<vmem>>, vector<32x128xf32>
      %c0_33 = arith.constant 0 : index
      %c0_34 = arith.constant 0 : index
      %67 = vector.load %arg12[%c0_33, %c0_34] : memref<32x128xf32, #tpu.memory_space<vmem>>, vector<32x128xf32>
      tpu.vector_store %arg12[%c0_33, %c0_34], %66 {strides = array<i32>} : memref<32x128xf32, #tpu.memory_space<vmem>>, vector<32x128xf32>,
      %c0_35 = arith.constant 0 : index
      %c0_36 = arith.constant 0 : index
      %68 = vector.load %arg4[%c0_35, %c0_36] : memref<32x128xf32, #tpu.memory_space<vmem>>, vector<32x128xf32>
      %c0_37 = arith.constant 0 : index
      %c0_38 = arith.constant 0 : index
      %69 = vector.load %arg13[%c0_37, %c0_38] : memref<32x128xf32, #tpu.memory_space<vmem>>, vector<32x128xf32>
      tpu.vector_store %arg13[%c0_37, %c0_38], %68 {strides = array<i32>} : memref<32x128xf32, #tpu.memory_space<vmem>>, vector<32x128xf32>,
    } else {
    }
    %c0 = arith.constant 0 : index
    %c0_1 = arith.constant 0 : index
    %3 = vector.load %arg12[%c0, %c0_1] : memref<32x128xf32, #tpu.memory_space<vmem>>, vector<32x128xf32>
    %c0_2 = arith.constant 0 : index
    %c0_3 = arith.constant 0 : index
    %4 = vector.load %arg13[%c0_2, %c0_3] : memref<32x128xf32, #tpu.memory_space<vmem>>, vector<32x128xf32>
    %c0_4 = arith.constant 0 : index
    %c0_5 = arith.constant 0 : index
    %5 = vector.load %arg5[%c0_4, %c0_5] : memref<128x8xf32, #tpu.memory_space<vmem>>, vector<128x8xf32>
    %c0_6 = arith.constant 0 : index
    %c0_7 = arith.constant 0 : index
    %6 = vector.load %arg6[%c0_6, %c0_7] : memref<128x32xf32, #tpu.memory_space<vmem>>, vector<128x32xf32>
    %c0_8 = arith.constant 0 : index
    %c0_9 = arith.constant 0 : index
    %c0_10 = arith.constant 0 : index
    %7 = vector.load %arg2[%c0_8, %c0_9, %c0_10] : memref<1x8x128xf32, #tpu.memory_space<vmem>>, vector<1x8x128xf32>
    %8 = vector.shape_cast %7 : vector<1x8x128xf32> to vector<8x128xf32>
    %cst = arith.constant dense<0.000000e+00> : vector<128x128xf32>
    %9 = tpu.matmul %5, %8, %cst {dimension_numbers = #tpu.dot_dimension_numbers<[1], [0], [0], [1], [0, 0, 1, 1], [], []>} : vector<128x8xf32>, vector<8x128xf32>, vector<128x128xf32> -> vector<128x128xf32>
    %cst_11 = arith.constant dense<0.000000e+00> : vector<128x128xf32>
    %10 = tpu.matmul %6, %3, %cst_11 {dimension_numbers = #tpu.dot_dimension_numbers<[1], [0], [0], [1], [0, 0, 1, 1], [], []>} : vector<128x32xf32>, vector<32x128xf32>, vector<128x128xf32> -> vector<128x128xf32>
    %11 = arith.addf %9, %10 : vector<128x128xf32>
    %c0_12 = arith.constant 0 : index
    %c0_13 = arith.constant 0 : index
    %12 = vector.load %arg7[%c0_12, %c0_13] : memref<128x1xf32, #tpu.memory_space<vmem>>, vector<128x1xf32>
    %13 = vector.broadcast %12 : vector<128x1xf32> to vector<128x128xf32>
    %14 = arith.addf %11, %13 : vector<128x128xf32>
    %c0_14 = arith.constant 0 : index
    %c0_15 = arith.constant 0 : index
    %15 = vector.load %arg8[%c0_14, %c0_15] : memref<96x1xf32, #tpu.memory_space<vmem>>, vector<96x1xf32>
    %16 = vector.extract_strided_slice %14 {offsets = [0, 0], sizes = [32, 128], strides = [1, 1]} : vector<128x128xf32> to vector<32x128xf32>
    %17 = vector.extract_strided_slice %15 {offsets = [0, 0], sizes = [32, 1], strides = [1, 1]} : vector<96x1xf32> to vector<32x1xf32>
    %18 = vector.broadcast %17 : vector<32x1xf32> to vector<32x128xf32>
    %19 = arith.mulf %18, %4 : vector<32x128xf32>
    %20 = arith.addf %16, %19 : vector<32x128xf32>
    %21 = arith.negf %20 : vector<32x128xf32>
    %22 = math.exp %21 : vector<32x128xf32>
    %cst_16 = arith.constant 1.000000e+00 : f32
    %23 = vector.broadcast %cst_16 : f32 to vector<32x128xf32>
    %24 = arith.addf %23, %22 : vector<32x128xf32>
    %25 = arith.divf %23, %24 : vector<32x128xf32>
    %26 = vector.extract_strided_slice %14 {offsets = [32, 0], sizes = [32, 128], strides = [1, 1]} : vector<128x128xf32> to vector<32x128xf32>
    %27 = vector.extract_strided_slice %15 {offsets = [32, 0], sizes = [32, 1], strides = [1, 1]} : vector<96x1xf32> to vector<32x1xf32>
    %28 = vector.broadcast %27 : vector<32x1xf32> to vector<32x128xf32>
    %29 = arith.mulf %28, %4 : vector<32x128xf32>
    %30 = arith.addf %26, %29 : vector<32x128xf32>
    %31 = arith.negf %30 : vector<32x128xf32>
    %32 = math.exp %31 : vector<32x128xf32>
    %cst_17 = arith.constant 1.000000e+00 : f32
    %33 = vector.broadcast %cst_17 : f32 to vector<32x128xf32>
    %34 = arith.addf %33, %32 : vector<32x128xf32>
    %35 = arith.divf %33, %34 : vector<32x128xf32>
    %36 = vector.extract_strided_slice %14 {offsets = [64, 0], sizes = [32, 128], strides = [1, 1]} : vector<128x128xf32> to vector<32x128xf32>
    %37 = math.tanh %36 : vector<32x128xf32>
    %38 = arith.mulf %35, %4 : vector<32x128xf32>
    %39 = arith.mulf %25, %37 : vector<32x128xf32>
    %40 = arith.addf %38, %39 : vector<32x128xf32>
    %41 = vector.extract_strided_slice %14 {offsets = [96, 0], sizes = [32, 128], strides = [1, 1]} : vector<128x128xf32> to vector<32x128xf32>
    %42 = vector.extract_strided_slice %15 {offsets = [64, 0], sizes = [32, 1], strides = [1, 1]} : vector<96x1xf32> to vector<32x1xf32>
    %43 = vector.broadcast %42 : vector<32x1xf32> to vector<32x128xf32>
    %44 = arith.mulf %43, %40 : vector<32x128xf32>
    %45 = arith.addf %41, %44 : vector<32x128xf32>
    %46 = arith.negf %45 : vector<32x128xf32>
    %47 = math.exp %46 : vector<32x128xf32>
    %cst_18 = arith.constant 1.000000e+00 : f32
    %48 = vector.broadcast %cst_18 : f32 to vector<32x128xf32>
    %49 = arith.addf %48, %47 : vector<32x128xf32>
    %50 = arith.divf %48, %49 : vector<32x128xf32>
    %51 = math.tanh %40 : vector<32x128xf32>
    %52 = arith.mulf %50, %51 : vector<32x128xf32>
    %c0_19 = arith.constant 0 : index
    %c0_20 = arith.constant 0 : index
    %53 = vector.load %arg13[%c0_19, %c0_20] : memref<32x128xf32, #tpu.memory_space<vmem>>, vector<32x128xf32>
    tpu.vector_store %arg13[%c0_19, %c0_20], %40 {strides = array<i32>} : memref<32x128xf32, #tpu.memory_space<vmem>>, vector<32x128xf32>,
    %c0_21 = arith.constant 0 : index
    %c0_22 = arith.constant 0 : index
    %54 = vector.load %arg12[%c0_21, %c0_22] : memref<32x128xf32, #tpu.memory_space<vmem>>, vector<32x128xf32>
    tpu.vector_store %arg12[%c0_21, %c0_22], %52 {strides = array<i32>} : memref<32x128xf32, #tpu.memory_space<vmem>>, vector<32x128xf32>,
    %c0_23 = arith.constant 0 : index
    %c0_24 = arith.constant 0 : index
    %55 = vector.load %arg9[%c0_23, %c0_24] : memref<32x1xf32, #tpu.memory_space<vmem>>, vector<32x1xf32>
    %56 = vector.broadcast %55 : vector<32x1xf32> to vector<32x128xf32>
    %57 = arith.mulf %52, %56 : vector<32x128xf32>
    %cst_25 = arith.constant dense<0.000000e+00> : vector<128xf32>
    %58 = vector.multi_reduction <add>, %57, %cst_25 [0] : vector<32x128xf32> to vector<128xf32>
    %59 = vector.shape_cast %58 : vector<128xf32> to vector<1x128xf32>
    %c0_26 = arith.constant 0 : index
    %c0_27 = arith.constant 0 : index
    %60 = memref.load %arg10[%c0_26, %c0_27] : memref<1x1xf32, #tpu.memory_space<smem>>
    %61 = vector.broadcast %60 : f32 to vector<1x128xf32>
    %62 = arith.addf %59, %61 : vector<1x128xf32>
    %c0_28 = arith.constant 0 : index
    %c0_29 = arith.constant 0 : index
    %c0_30 = arith.constant 0 : index
    %63 = vector.load %arg11[%c0_28, %c0_29, %c0_30] : memref<1x1x128xf32, #tpu.memory_space<vmem>>, vector<1x1x128xf32>
    %64 = vector.shape_cast %63 : vector<1x1x128xf32> to vector<1x128xf32>
    %65 = vector.shape_cast %62 : vector<1x128xf32> to vector<1x1x128xf32>
    tpu.vector_store %arg11[%c0_28, %c0_29, %c0_30], %65 {strides = array<i32>} : memref<1x1x128xf32, #tpu.memory_space<vmem>>, vector<1x1x128xf32>,
    return
  }
  func.func @transform_0(%arg0: i32, %arg1: i32) -> (i32, i32, i32) {
    %c0_i32 = arith.constant 0 : i32
    %c0_i32_0 = arith.constant 0 : i32
    return %arg1, %c0_i32, %arg0 : i32, i32, i32
  }
  func.func @transform_1(%arg0: i32, %arg1: i32) -> (i32, i32) {
    %c0_i32 = arith.constant 0 : i32
    %c0_i32_0 = arith.constant 0 : i32
    return %c0_i32, %arg0 : i32, i32
  }
  func.func @transform_2(%arg0: i32, %arg1: i32) -> (i32, i32) {
    %c0_i32 = arith.constant 0 : i32
    %c0_i32_0 = arith.constant 0 : i32
    return %c0_i32, %arg0 : i32, i32
  }
  func.func @transform_3(%arg0: i32, %arg1: i32) -> (i32, i32) {
    %c0_i32 = arith.constant 0 : i32
    %c0_i32_0 = arith.constant 0 : i32
    %c0_i32_1 = arith.constant 0 : i32
    return %c0_i32, %c0_i32_0 : i32, i32
  }
  func.func @transform_4(%arg0: i32, %arg1: i32) -> (i32, i32) {
    %c0_i32 = arith.constant 0 : i32
    %c0_i32_0 = arith.constant 0 : i32
    %c0_i32_1 = arith.constant 0 : i32
    return %c0_i32, %c0_i32_0 : i32, i32
  }
  func.func @transform_5(%arg0: i32, %arg1: i32) -> (i32, i32) {
    %c0_i32 = arith.constant 0 : i32
    %c0_i32_0 = arith.constant 0 : i32
    %c0_i32_1 = arith.constant 0 : i32
    return %c0_i32, %c0_i32_0 : i32, i32
  }
  func.func @transform_6(%arg0: i32, %arg1: i32) -> (i32, i32) {
    %c0_i32 = arith.constant 0 : i32
    %c0_i32_0 = arith.constant 0 : i32
    %c0_i32_1 = arith.constant 0 : i32
    return %c0_i32, %c0_i32_0 : i32, i32
  }
  func.func @transform_7(%arg0: i32, %arg1: i32) -> (i32, i32) {
    %c0_i32 = arith.constant 0 : i32
    %c0_i32_0 = arith.constant 0 : i32
    %c0_i32_1 = arith.constant 0 : i32
    return %c0_i32, %c0_i32_0 : i32, i32
  }
  func.func @transform_8(%arg0: i32, %arg1: i32) -> (i32, i32) {
    %c0_i32 = arith.constant 0 : i32
    %c0_i32_0 = arith.constant 0 : i32
    %c0_i32_1 = arith.constant 0 : i32
    return %c0_i32, %c0_i32_0 : i32, i32
  }
  func.func @transform_9(%arg0: i32, %arg1: i32) -> (i32, i32, i32) {
    %c0_i32 = arith.constant 0 : i32
    %c0_i32_0 = arith.constant 0 : i32
    return %arg1, %c0_i32, %arg0 : i32, i32, i32
  }
  func.func @transform_10(%arg0: i32, %arg1: i32) -> (i32, i32) {
    %c0_i32 = arith.constant 0 : i32
    %c0_i32_0 = arith.constant 0 : i32
    return %c0_i32, %arg0 : i32, i32
  }
  func.func @transform_11(%arg0: i32, %arg1: i32) -> (i32, i32) {
    %c0_i32 = arith.constant 0 : i32
    %c0_i32_0 = arith.constant 0 : i32
    return %c0_i32, %arg0 : i32, i32
  }
}

</mosaic_0001>

<llo_original>
// kernel: tpu_custom_call.1
$region0: #{tpu_custom_call.1}
  #allocation0 [shape = 'u32[]', space=smem, size = 0x4, offset = 0x4, fixed_abs, tag = 'smem constant byte address 0x4 - core index']
  #allocation1 [shape = 'u32[144,128]{1,0:T(1,128)}', space=vmem, size = 0x12000, scoped, tag = 'internal scratch']
  #allocation2 [shape = 'f32[1,1]{1,0:T(1,128)S(6)}', space=smem, size = 0x200, scoped, tag = 'scoped memory for tpu_custom_call.1']
  %s0 = inlined_call_operand.vmem [shape: f32[1,8,200], index: 0, kind: input, shape index: {}]
  %s1 = inlined_call_operand.vmem [shape: f32[32,200], index: 1, kind: input, shape index: {}]
  %s2 = inlined_call_operand.vmem [shape: f32[32,200], index: 2, kind: input, shape index: {}]
  %s3 = inlined_call_operand.vmem [shape: f32[128,8], index: 3, kind: input, shape index: {}]
  %s4 = inlined_call_operand.vmem [shape: f32[128,32], index: 4, kind: input, shape index: {}]
  %s5 = inlined_call_operand.vmem [shape: f32[128,1], index: 5, kind: input, shape index: {}]
  %s6 = inlined_call_operand.vmem [shape: f32[96,1], index: 6, kind: input, shape index: {}]
  %s7 = inlined_call_operand.vmem [shape: f32[32,1], index: 7, kind: input, shape index: {}]
  %s8 = inlined_call_operand.<no memory space> [shape: f32[1,1], index: 8, kind: input, shape index: {}]
  %s9 = inlined_call_operand.hbm [shape: f32[1,1,200], index: 9, kind: output, shape index: {0}]
  %s10 = inlined_call_operand.hbm [shape: f32[32,200], index: 10, kind: output, shape index: {1}]
  %s11 = inlined_call_operand.hbm [shape: f32[32,200], index: 11, kind: output, shape index: {2}]
  %12 = xla_tuple %s9, %s10, %s11
  %s13 = sld [smem:[#allocation0]]
  $region165: #{tpu_custom_call.1} parent=0
    _
  %s15 = ssub.s32 1, %s13
  %s16 = scalar_select 0, %s15, %s13
  %17 = sst [smem:[#allocation2]] %s8
  $region1: #{tpu_custom_call.1} parent=0
    #allocation3 [shape = 'u8[32768]{0}', space=vmem, size = 0x8000, scoped, tag = 'input window, operand 1']
    #allocation4 [shape = 'u8[32768]{0}', space=vmem, size = 0x8000, scoped, tag = 'input window, operand 2']
    #allocation5 [shape = 'u8[1024]{0}', space=vmem, size = 0x400, scoped, tag = 'output window, operand 0']
    #allocation6 [shape = 's32[2]{0}', space=sflag, size = 0x8, scoped, tag = 'scoped memory for tpu_custom_call.1']
    #allocation7 [shape = 'u8[32768]{0}', space=vmem, size = 0x8000, scoped, tag = 'output window, operand 1']
    #allocation8 [shape = 's32[2]{0}', space=sflag, size = 0x8, scoped, tag = 'scoped memory for tpu_custom_call.1']
    #allocation9 [shape = 'u8[32768]{0}', space=vmem, size = 0x8000, scoped, tag = 'output window, operand 2']
    %18 = vsyncpa [#allocation6], 0
    %s19 = scalar_lea.sflag [#allocation6], 1
    %20 = vsyncpa %s19, 0
    %21 = vsyncpa [#allocation8], 0
    %s22 = scalar_lea.sflag [#allocation8], 1
    %23 = vsyncpa %s22, 0
    loop: start=0, step=1, limit=4
    $region2: #{tpu_custom_call.1} parent=1 // loop_pre_header
      _
    $region3: #{tpu_custom_call.1} parent=1 // loop_header
      %s25 = sphi 0, %s29
      %p26 = scmp.ge.s32.totalorder %s25, 4
      %s32 = sphi 0, %s44
      %s33 = sphi 0, %s40
      %s34 = sphi 0, %s32
      %s35 = sphi 0, %s33
      %s36 = sphi 0, %s34
      %s37 = sphi 0, %s35
      %s49 = sphi 0, %s51
      %s52 = sphi 0, %s49
      %s53 = sphi 0, %s52
      %s69 = sphi 0, %s53
      %s75 = sphi 0, %s77
      %s78 = sphi 0, %s75
      %s79 = sphi 0, %s78
      %s95 = sphi 0, %s79
      %s101 = sphi 0, %s103
      %s104 = sphi 0, %s101
      %s105 = sphi 0, %s104
      %s121 = sphi 0, %s105
      %s125 = sphi 0, %s125
      %s127 = sphi 0, %s125
      %s128 = sphi 0, %s127
      %s142 = sphi 0, %s128
      %s146 = sphi 0, %s146
      %s148 = sphi 0, %s146
      %s149 = sphi 0, %s148
      %s163 = sphi 0, %s149
      %s167 = sphi 0, %s167
      %s169 = sphi 0, %s167
      %s170 = sphi 0, %s169
      %s184 = sphi 0, %s170
      %s188 = sphi 0, %s188
      %s190 = sphi 0, %s188
      %s191 = sphi 0, %s190
      %s205 = sphi 0, %s191
      %s209 = sphi 0, %s209
      %s211 = sphi 0, %s209
      %s212 = sphi 0, %s211
      %s226 = sphi 0, %s212
      %s230 = sphi 0, %s230
      %s232 = sphi 0, %s230
      %s233 = sphi 0, %s232
      %s247 = sphi 0, %s233
      %s255 = sphi 0, %s257
      %s258 = sphi 0, %s255
      %s259 = sphi 0, %s258
      %s275 = sphi 0, %s259
      %s281 = sphi 0, %s283
      %s284 = sphi 0, %s281
      %s285 = sphi 0, %s284
      %s301 = sphi 0, %s285
      %s307 = sphi 0, %s309
      %s310 = sphi 0, %s307
      %s311 = sphi 0, %s310
      %s327 = sphi 0, %s311
    $region4: #{tpu_custom_call.1} parent=1 // loop_header_branch
      %28 = sbr.rel (%p26) target = $region8
    $region5: #{tpu_custom_call.1} parent=1 // loop_body
      %s30 = ssub.s32 %s25, 1
      %s31 = ssub.s32 %s25, 2
      %s38 = sadd.s32 1, %s33
      %p39 = scmp.ge.s32.totalorder %s38, 1
      %s40 = scalar_select %p39, 0, %s38
      %s41 = sadd.s32 1, %s32
      %s42 = scalar_select %p39, %s41, %s32
      %p43 = scmp.ge.s32.totalorder %s42, 2
      %s44 = scalar_select %p43, 0, %s42
      %s45 = ssub.s32 %s33, %s40
      %s46 = ssub.s32 %s32, %s44
      %s47 = sor.u32 %s45, %s46
      %p48 = scmp.eq.s32.totalorder %s47, 0
      %s50 = sadd.s32 %s49, 1
      %s51 = scalar_select %p48, %s49, %s50
      %p54 = pneg %p48
      %p55 = scmp.eq.s32.totalorder %s25, 1
      %p56 = por %p54, %p55
      %p57 = scmp.ne.s32.totalorder %s49, %s52
      %p58 = scmp.eq.s32.totalorder %s25, 0
      %p59 = por %p57, %p58
      %p60 = scmp.ne.s32.totalorder %s49, %s52
      %p61 = scmp.eq.s32.totalorder %s30, 1
      %p62 = por %p60, %p61
      %p63 = scmp.ne.s32.totalorder %s52, %s53
      %p64 = scmp.eq.s32.totalorder %s30, 0
      %p65 = por %p63, %p64
      %p66 = scmp.ne.s32.totalorder %s52, %s53
      %p67 = scmp.eq.s32.totalorder %s31, 1
      %p68 = por %p66, %p67
      %p70 = scmp.ne.s32.totalorder %s53, %s69
      %p71 = scmp.eq.s32.totalorder %s31, 0
      %p72 = por %p70, %p71
      %s73 = ssub.s32 %s32, %s44
      %p74 = scmp.eq.s32.totalorder %s73, 0
      %s76 = sadd.s32 %s75, 1
      %s77 = scalar_select %p74, %s75, %s76
      %p80 = pneg %p74
      %p81 = scmp.eq.s32.totalorder %s25, 1
      %p82 = por %p80, %p81
      %p83 = scmp.ne.s32.totalorder %s75, %s78
      %p84 = scmp.eq.s32.totalorder %s25, 0
      %p85 = por %p83, %p84
      %p86 = scmp.ne.s32.totalorder %s75, %s78
      %p87 = scmp.eq.s32.totalorder %s30, 1
      %p88 = por %p86, %p87
      %p89 = scmp.ne.s32.totalorder %s78, %s79
      %p90 = scmp.eq.s32.totalorder %s30, 0
      %p91 = por %p89, %p90
      %p92 = scmp.ne.s32.totalorder %s78, %s79
      %p93 = scmp.eq.s32.totalorder %s31, 1
      %p94 = por %p92, %p93
      %p96 = scmp.ne.s32.totalorder %s79, %s95
      %p97 = scmp.eq.s32.totalorder %s31, 0
      %p98 = por %p96, %p97
      %s99 = ssub.s32 %s32, %s44
      %p100 = scmp.eq.s32.totalorder %s99, 0
      %s102 = sadd.s32 %s101, 1
      %s103 = scalar_select %p100, %s101, %s102
      %p106 = pneg %p100
      %p107 = scmp.eq.s32.totalorder %s25, 1
      %p108 = por %p106, %p107
      %p109 = scmp.ne.s32.totalorder %s101, %s104
      %p110 = scmp.eq.s32.totalorder %s25, 0
      %p111 = por %p109, %p110
      %p112 = scmp.ne.s32.totalorder %s101, %s104
      %p113 = scmp.eq.s32.totalorder %s30, 1
      %p114 = por %p112, %p113
      %p115 = scmp.ne.s32.totalorder %s104, %s105
      %p116 = scmp.eq.s32.totalorder %s30, 0
      %p117 = por %p115, %p116
      %p118 = scmp.ne.s32.totalorder %s104, %s105
      %p119 = scmp.eq.s32.totalorder %s31, 1
      %p120 = por %p118, %p119
      %p122 = scmp.ne.s32.totalorder %s105, %s121
      %p123 = scmp.eq.s32.totalorder %s31, 0
      %p124 = por %p122, %p123
      %s126 = sadd.s32 %s125, 1
      %p129 = scmp.eq.s32.totalorder %s25, 1
      %p130 = scmp.ne.s32.totalorder %s125, %s127
      %p131 = scmp.eq.s32.totalorder %s25, 0
      %p132 = por %p130, %p131
      %p133 = scmp.ne.s32.totalorder %s125, %s127
      %p134 = scmp.eq.s32.totalorder %s30, 1
      %p135 = por %p133, %p134
      %p136 = scmp.ne.s32.totalorder %s127, %s128
      %p137 = scmp.eq.s32.totalorder %s30, 0
      %p138 = por %p136, %p137
      %p139 = scmp.ne.s32.totalorder %s127, %s128
      %p140 = scmp.eq.s32.totalorder %s31, 1
      %p141 = por %p139, %p140
      %p143 = scmp.ne.s32.totalorder %s128, %s142
      %p144 = scmp.eq.s32.totalorder %s31, 0
      %p145 = por %p143, %p144
      %s147 = sadd.s32 %s146, 1
      %p150 = scmp.eq.s32.totalorder %s25, 1
      %p151 = scmp.ne.s32.totalorder %s146, %s148
      %p152 = scmp.eq.s32.totalorder %s25, 0
      %p153 = por %p151, %p152
      %p154 = scmp.ne.s32.totalorder %s146, %s148
      %p155 = scmp.eq.s32.totalorder %s30, 1
      %p156 = por %p154, %p155
      %p157 = scmp.ne.s32.totalorder %s148, %s149
      %p158 = scmp.eq.s32.totalorder %s30, 0
      %p159 = por %p157, %p158
      %p160 = scmp.ne.s32.totalorder %s148, %s149
      %p161 = scmp.eq.s32.totalorder %s31, 1
      %p162 = por %p160, %p161
      %p164 = scmp.ne.s32.totalorder %s149, %s163
      %p165 = scmp.eq.s32.totalorder %s31, 0
      %p166 = por %p164, %p165
      %s168 = sadd.s32 %s167, 1
      %p171 = scmp.eq.s32.totalorder %s25, 1
      %p172 = scmp.ne.s32.totalorder %s167, %s169
      %p173 = scmp.eq.s32.totalorder %s25, 0
      %p174 = por %p172, %p173
      %p175 = scmp.ne.s32.totalorder %s167, %s169
      %p176 = scmp.eq.s32.totalorder %s30, 1
      %p177 = por %p175, %p176
      %p178 = scmp.ne.s32.totalorder %s169, %s170
      %p179 = scmp.eq.s32.totalorder %s30, 0
      %p180 = por %p178, %p179
      %p181 = scmp.ne.s32.totalorder %s169, %s170
      %p182 = scmp.eq.s32.totalorder %s31, 1
      %p183 = por %p181, %p182
      %p185 = scmp.ne.s32.totalorder %s170, %s184
      %p186 = scmp.eq.s32.totalorder %s31, 0
      %p187 = por %p185, %p186
      %s189 = sadd.s32 %s188, 1
      %p192 = scmp.eq.s32.totalorder %s25, 1
      %p193 = scmp.ne.s32.totalorder %s188, %s190
      %p194 = scmp.eq.s32.totalorder %s25, 0
      %p195 = por %p193, %p194
      %p196 = scmp.ne.s32.totalorder %s188, %s190
      %p197 = scmp.eq.s32.totalorder %s30, 1
      %p198 = por %p196, %p197
      %p199 = scmp.ne.s32.totalorder %s190, %s191
      %p200 = scmp.eq.s32.totalorder %s30, 0
      %p201 = por %p199, %p200
      %p202 = scmp.ne.s32.totalorder %s190, %s191
      %p203 = scmp.eq.s32.totalorder %s31, 1
      %p204 = por %p202, %p203
      %p206 = scmp.ne.s32.totalorder %s191, %s205
      %p207 = scmp.eq.s32.totalorder %s31, 0
      %p208 = por %p206, %p207
      %s210 = sadd.s32 %s209, 1
      %p213 = scmp.eq.s32.totalorder %s25, 1
      %p214 = scmp.ne.s32.totalorder %s209, %s211
      %p215 = scmp.eq.s32.totalorder %s25, 0
      %p216 = por %p214, %p215
      %p217 = scmp.ne.s32.totalorder %s209, %s211
      %p218 = scmp.eq.s32.totalorder %s30, 1
      %p219 = por %p217, %p218
      %p220 = scmp.ne.s32.totalorder %s211, %s212
      %p221 = scmp.eq.s32.totalorder %s30, 0
      %p222 = por %p220, %p221
      %p223 = scmp.ne.s32.totalorder %s211, %s212
      %p224 = scmp.eq.s32.totalorder %s31, 1
      %p225 = por %p223, %p224
      %p227 = scmp.ne.s32.totalorder %s212, %s226
      %p228 = scmp.eq.s32.totalorder %s31, 0
      %p229 = por %p227, %p228
      %s231 = sadd.s32 %s230, 1
      %p234 = scmp.eq.s32.totalorder %s25, 1
      %p235 = scmp.ne.s32.totalorder %s230, %s232
      %p236 = scmp.eq.s32.totalorder %s25, 0
      %p237 = por %p235, %p236
      %p238 = scmp.ne.s32.totalorder %s230, %s232
      %p239 = scmp.eq.s32.totalorder %s30, 1
      %p240 = por %p238, %p239
      %p241 = scmp.ne.s32.totalorder %s232, %s233
      %p242 = scmp.eq.s32.totalorder %s30, 0
      %p243 = por %p241, %p242
      %p244 = scmp.ne.s32.totalorder %s232, %s233
      %p245 = scmp.eq.s32.totalorder %s31, 1
      %p246 = por %p244, %p245
      %p248 = scmp.ne.s32.totalorder %s233, %s247
      %p249 = scmp.eq.s32.totalorder %s31, 0
      %p250 = por %p248, %p249
      %s251 = ssub.s32 %s33, %s40
      %s252 = ssub.s32 %s32, %s44
      %s253 = sor.u32 %s251, %s252
      %p254 = scmp.eq.s32.totalorder %s253, 0
      %s256 = sadd.s32 %s255, 1
      %s257 = scalar_select %p254, %s255, %s256
      %p260 = pneg %p254
      %p261 = scmp.eq.s32.totalorder %s25, 1
      %p262 = por %p260, %p261
      %p263 = scmp.ne.s32.totalorder %s255, %s258
      %p264 = scmp.eq.s32.totalorder %s25, 0
      %p265 = por %p263, %p264
      %p266 = scmp.ne.s32.totalorder %s255, %s258
      %p267 = scmp.eq.s32.totalorder %s30, 1
      %p268 = por %p266, %p267
      %p269 = scmp.ne.s32.totalorder %s258, %s259
      %p270 = scmp.eq.s32.totalorder %s30, 0
      %p271 = por %p269, %p270
      %p272 = scmp.ne.s32.totalorder %s258, %s259
      %p273 = scmp.eq.s32.totalorder %s31, 1
      %p274 = por %p272, %p273
      %p276 = scmp.ne.s32.totalorder %s259, %s275
      %p277 = scmp.eq.s32.totalorder %s31, 0
      %p278 = por %p276, %p277
      %s279 = ssub.s32 %s32, %s44
      %p280 = scmp.eq.s32.totalorder %s279, 0
      %s282 = sadd.s32 %s281, 1
      %s283 = scalar_select %p280, %s281, %s282
      %p286 = pneg %p280
      %p287 = scmp.eq.s32.totalorder %s25, 1
      %p288 = por %p286, %p287
      %p289 = scmp.ne.s32.totalorder %s281, %s284
      %p290 = scmp.eq.s32.totalorder %s25, 0
      %p291 = por %p289, %p290
      %p292 = scmp.ne.s32.totalorder %s281, %s284
      %p293 = scmp.eq.s32.totalorder %s30, 1
      %p294 = por %p292, %p293
      %p295 = scmp.ne.s32.totalorder %s284, %s285
      %p296 = scmp.eq.s32.totalorder %s30, 0
      %p297 = por %p295, %p296
      %p298 = scmp.ne.s32.totalorder %s284, %s285
      %p299 = scmp.eq.s32.totalorder %s31, 1
      %p300 = por %p298, %p299
      %p302 = scmp.ne.s32.totalorder %s285, %s301
      %p303 = scmp.eq.s32.totalorder %s31, 0
      %p304 = por %p302, %p303
      %s305 = ssub.s32 %s32, %s44
      %p306 = scmp.eq.s32.totalorder %s305, 0
      %s308 = sadd.s32 %s307, 1
      %s309 = scalar_select %p306, %s307, %s308
      %p312 = pneg %p306
      %p313 = scmp.eq.s32.totalorder %s25, 1
      %p314 = por %p312, %p313
      %p315 = scmp.ne.s32.totalorder %s307, %s310
      %p316 = scmp.eq.s32.totalorder %s25, 0
      %p317 = por %p315, %p316
      %p318 = scmp.ne.s32.totalorder %s307, %s310
      %p319 = scmp.eq.s32.totalorder %s30, 1
      %p320 = por %p318, %p319
      %p321 = scmp.ne.s32.totalorder %s310, %s311
      %p322 = scmp.eq.s32.totalorder %s30, 0
      %p323 = por %p321, %p322
      %p324 = scmp.ne.s32.totalorder %s310, %s311
      %p325 = scmp.eq.s32.totalorder %s31, 1
      %p326 = por %p324, %p325
      %p328 = scmp.ne.s32.totalorder %s311, %s327
      %p329 = scmp.eq.s32.totalorder %s31, 0
      %p330 = por %p328, %p329
      %p331 = scmp.le.s32.totalorder 1, %s25
      %p332 = scmp.lt.s32.totalorder %s25, 3
      %p333 = pnand %p331, %p332
      %p334 = pneg %p333
      // Predicated region
      $region9: #{tpu_custom_call.1} parent=5 // pred_check
        _
      $region10: #{tpu_custom_call.1} parent=5 // pred_check_branch
        %336 = sbr.rel (%p333) target = $region12
      $region11: #{tpu_custom_call.1} parent=5 // pred_region
        %s337 = ssub.s32 %s25, 1
        // Predicated region
        $region13: #{tpu_custom_call.1} parent=11 // pred_check
          %p338 = pneg %p138
        $region14: #{tpu_custom_call.1} parent=11 // pred_check_branch
          %340 = sbr.rel (%p338) target = $region16
        $region15: #{tpu_custom_call.1} parent=11 // pred_region
          _
        $region16: #{tpu_custom_call.1} parent=11 // pred_fallthru
          _
        // Predicated region
        $region17: #{tpu_custom_call.1} parent=11 // pred_check
          %p341 = pneg %p159
        $region18: #{tpu_custom_call.1} parent=11 // pred_check_branch
          %343 = sbr.rel (%p341) target = $region20
        $region19: #{tpu_custom_call.1} parent=11 // pred_region
          _
        $region20: #{tpu_custom_call.1} parent=11 // pred_fallthru
          _
        // Predicated region
        $region21: #{tpu_custom_call.1} parent=11 // pred_check
          %p344 = pneg %p180
        $region22: #{tpu_custom_call.1} parent=11 // pred_check_branch
          %346 = sbr.rel (%p344) target = $region24
        $region23: #{tpu_custom_call.1} parent=11 // pred_region
          _
        $region24: #{tpu_custom_call.1} parent=11 // pred_fallthru
          _
        // Predicated region
        $region25: #{tpu_custom_call.1} parent=11 // pred_check
          %p347 = pneg %p201
        $region26: #{tpu_custom_call.1} parent=11 // pred_check_branch
          %349 = sbr.rel (%p347) target = $region28
        $region27: #{tpu_custom_call.1} parent=11 // pred_region
          _
        $region28: #{tpu_custom_call.1} parent=11 // pred_fallthru
          _
        // Predicated region
        $region29: #{tpu_custom_call.1} parent=11 // pred_check
          %p350 = pneg %p222
        $region30: #{tpu_custom_call.1} parent=11 // pred_check_branch
          %352 = sbr.rel (%p350) target = $region32
        $region31: #{tpu_custom_call.1} parent=11 // pred_region
          _
        $region32: #{tpu_custom_call.1} parent=11 // pred_fallthru
          _
        // Predicated region
        $region33: #{tpu_custom_call.1} parent=11 // pred_check
          %p353 = pneg %p243
        $region34: #{tpu_custom_call.1} parent=11 // pred_check_branch
          %355 = sbr.rel (%p353) target = $region36
        $region35: #{tpu_custom_call.1} parent=11 // pred_region
          _
        $region36: #{tpu_custom_call.1} parent=11 // pred_fallthru
          _
      $region12: #{tpu_custom_call.1} parent=5 // pred_fallthru
        _
      %p356 = scmp.lt.s32.totalorder %s25, 2
      // Predicated region
      $region37: #{tpu_custom_call.1} parent=5 // pred_check
        %p357 = pneg %p356
      $region38: #{tpu_custom_call.1} parent=5 // pred_check_branch
        %359 = sbr.rel (%p357) target = $region40
      $region39: #{tpu_custom_call.1} parent=5 // pred_region
        // Predicated region
        $region41: #{tpu_custom_call.1} parent=39 // pred_check
          %p360 = pneg %p59
        $region42: #{tpu_custom_call.1} parent=39 // pred_check_branch
          %362 = sbr.rel (%p360) target = $region44
        $region43: #{tpu_custom_call.1} parent=39 // pred_region
          %p363 = scmp.lt.s32.totalorder %s33, 0
          %s364 = scalar_select %p363, %s33, 0
          %p365 = scmp.lt.s32.totalorder %s32, 1
          %s366 = scalar_select %p365, %s32, 1
          %s367 = smul.addr %s364, 2
          %s368 = sadd.s32 %s366, %s367
          %s369 = smul.addr %s368, 8
          %s370 = scalar_lea.vmem %s0, %s369
        $region44: #{tpu_custom_call.1} parent=39 // pred_fallthru
          _
        // Predicated region
        $region45: #{tpu_custom_call.1} parent=39 // pred_check
          %p371 = pneg %p85
        $region46: #{tpu_custom_call.1} parent=39 // pred_check_branch
          %373 = sbr.rel (%p371) target = $region48
        $region47: #{tpu_custom_call.1} parent=39 // pred_region
          %s374 = sand.u32 %s75, 1
          %s375 = sand.u32 %s75, 1
          %s376 = smul.addr %s375, 32
          %s377 = scalar_lea.vmem [#allocation3], %s376
          %s378 = smul.addr %s32, 8
          %s379 = scalar_lea.vmem %s1, %s378
          // Predicated region
          $region49: #{tpu_custom_call.1} parent=47 // pred_check
            _
          $region50: #{tpu_custom_call.1} parent=47 // pred_check_branch
            %381 = sbr.rel (0) target = $region52
          $region51: #{tpu_custom_call.1} parent=47 // pred_region
            // Predicated region
            $region53: #{tpu_custom_call.1} parent=51 // pred_check
              _
            $region54: #{tpu_custom_call.1} parent=51 // pred_check_branch
              %383 = sbr.rel (0) target = $region56
            $region55: #{tpu_custom_call.1} parent=51 // pred_region
              // Predicated region
              $region68: #{tpu_custom_call.1} parent=55 // pred_check
                _
              $region69: #{tpu_custom_call.1} parent=55 // pred_check_branch
                %405 = sbr.rel (0) target = $region71
              $region70: #{tpu_custom_call.1} parent=55 // pred_region
                loop: start=0, step=1, limit=1
                $region72: #{tpu_custom_call.1} parent=70 // loop_pre_header
                  _
                $region73: #{tpu_custom_call.1} parent=70 // loop_header
                  %s407 = sphi 0, %s411
                  %p408 = scmp.ge.s32.totalorder %s407, 1
                  %s412 = sphi %s379, %s379
                  %s413 = sphi %s377, %s377
                $region74: #{tpu_custom_call.1} parent=70 // loop_header_branch
                  %410 = sbr.rel (%p408) target = $region78
                $region75: #{tpu_custom_call.1} parent=70 // loop_body
                  %v414 = vld [vmem:[%s412] sm:$0xff]
                  %415 = vst [vmem:[%s413] sm:$0xff] %v414
                  %v416 = vld [vmem:[%s412 + $0x10] sm:$0xff]
                  %417 = vst [vmem:[%s413 + $0x8] sm:$0xff] %v416
                  %v418 = vld [vmem:[%s412 + $0x20] sm:$0xff]
                  %419 = vst [vmem:[%s413 + $0x10] sm:$0xff] %v418
                  %v420 = vld [vmem:[%s412 + $0x30] sm:$0xff]
                  %421 = vst [vmem:[%s413 + $0x18] sm:$0xff] %v420
                $region76: #{tpu_custom_call.1} parent=70 // loop_footer
                  %s411 = sadd.s32 1, %s407
                $region77: #{tpu_custom_call.1} parent=70 // loop_footer_branch
                  %406 = sbr.rel target = $region73
                $region78: #{tpu_custom_call.1} parent=70 // loop_exit
                  _
              $region71: #{tpu_custom_call.1} parent=55 // pred_fallthru
                _
              // Predicated region
              $region79: #{tpu_custom_call.1} parent=55 // pred_check
                _
              $region80: #{tpu_custom_call.1} parent=55 // pred_check_branch
                %423 = sbr.rel target = $region82
              $region81: #{tpu_custom_call.1} parent=55 // pred_region
                _
              $region82: #{tpu_custom_call.1} parent=55 // pred_fallthru
                _
            $region56: #{tpu_custom_call.1} parent=51 // pred_fallthru
              _
            // Predicated region
            $region57: #{tpu_custom_call.1} parent=51 // pred_check
              _
            $region58: #{tpu_custom_call.1} parent=51 // pred_check_branch
              %385 = sbr.rel target = $region60
            $region59: #{tpu_custom_call.1} parent=51 // pred_region
              %s387 = ssub.s32 256, 1
              loop: start=0, step=1, limit=1
              $region61: #{tpu_custom_call.1} parent=59 // loop_pre_header
                _
              $region62: #{tpu_custom_call.1} parent=59 // loop_header
                %s389 = sphi 0, %s393
                %p390 = scmp.ge.s32.totalorder %s389, 1
                %s394 = sphi %s379, %s379
                %s395 = sphi %s377, %s377
              $region63: #{tpu_custom_call.1} parent=59 // loop_header_branch
                %392 = sbr.rel (%p390) target = $region67
              $region64: #{tpu_custom_call.1} parent=59 // loop_body
                %v396 = vld [vmem:[%s394] sm:%s387]
                %397 = vst [vmem:[%s395] sm:%s387] %v396
                %v398 = vld [vmem:[%s394 + $0x10] sm:%s387]
                %399 = vst [vmem:[%s395 + $0x8] sm:%s387] %v398
                %v400 = vld [vmem:[%s394 + $0x20] sm:%s387]
                %401 = vst [vmem:[%s395 + $0x10] sm:%s387] %v400
                %v402 = vld [vmem:[%s394 + $0x30] sm:%s387]
                %403 = vst [vmem:[%s395 + $0x18] sm:%s387] %v402
              $region65: #{tpu_custom_call.1} parent=59 // loop_footer
                %s393 = sadd.s32 1, %s389
              $region66: #{tpu_custom_call.1} parent=59 // loop_footer_branch
                %388 = sbr.rel target = $region62
              $region67: #{tpu_custom_call.1} parent=59 // loop_exit
                _
            $region60: #{tpu_custom_call.1} parent=51 // pred_fallthru
              _
          $region52: #{tpu_custom_call.1} parent=47 // pred_fallthru
            _
          %424 = vnop
        $region48: #{tpu_custom_call.1} parent=39 // pred_fallthru
          _
        // Predicated region
        $region83: #{tpu_custom_call.1} parent=39 // pred_check
          %p425 = pneg %p111
        $region84: #{tpu_custom_call.1} parent=39 // pred_check_branch
          %427 = sbr.rel (%p425) target = $region86
        $region85: #{tpu_custom_call.1} parent=39 // pred_region
          %s428 = sand.u32 %s101, 1
          %s429 = sand.u32 %s101, 1
          %s430 = smul.addr %s429, 32
          %s431 = scalar_lea.vmem [#allocation4], %s430
          %s432 = smul.addr %s32, 8
          %s433 = scalar_lea.vmem %s2, %s432
          // Predicated region
          $region87: #{tpu_custom_call.1} parent=85 // pred_check
            _
          $region88: #{tpu_custom_call.1} parent=85 // pred_check_branch
            %435 = sbr.rel (0) target = $region90
          $region89: #{tpu_custom_call.1} parent=85 // pred_region
            // Predicated region
            $region91: #{tpu_custom_call.1} parent=89 // pred_check
              _
            $region92: #{tpu_custom_call.1} parent=89 // pred_check_branch
              %437 = sbr.rel (0) target = $region94
            $region93: #{tpu_custom_call.1} parent=89 // pred_region
              // Predicated region
              $region106: #{tpu_custom_call.1} parent=93 // pred_check
                _
              $region107: #{tpu_custom_call.1} parent=93 // pred_check_branch
                %459 = sbr.rel (0) target = $region109
              $region108: #{tpu_custom_call.1} parent=93 // pred_region
                loop: start=0, step=1, limit=1
                $region110: #{tpu_custom_call.1} parent=108 // loop_pre_header
                  _
                $region111: #{tpu_custom_call.1} parent=108 // loop_header
                  %s461 = sphi 0, %s465
                  %p462 = scmp.ge.s32.totalorder %s461, 1
                  %s466 = sphi %s433, %s433
                  %s467 = sphi %s431, %s431
                $region112: #{tpu_custom_call.1} parent=108 // loop_header_branch
                  %464 = sbr.rel (%p462) target = $region116
                $region113: #{tpu_custom_call.1} parent=108 // loop_body
                  %v468 = vld [vmem:[%s466] sm:$0xff]
                  %469 = vst [vmem:[%s467] sm:$0xff] %v468
                  %v470 = vld [vmem:[%s466 + $0x10] sm:$0xff]
                  %471 = vst [vmem:[%s467 + $0x8] sm:$0xff] %v470
                  %v472 = vld [vmem:[%s466 + $0x20] sm:$0xff]
                  %473 = vst [vmem:[%s467 + $0x10] sm:$0xff] %v472
                  %v474 = vld [vmem:[%s466 + $0x30] sm:$0xff]
                  %475 = vst [vmem:[%s467 + $0x18] sm:$0xff] %v474
                $region114: #{tpu_custom_call.1} parent=108 // loop_footer
                  %s465 = sadd.s32 1, %s461
                $region115: #{tpu_custom_call.1} parent=108 // loop_footer_branch
                  %460 = sbr.rel target = $region111
                $region116: #{tpu_custom_call.1} parent=108 // loop_exit
                  _
              $region109: #{tpu_custom_call.1} parent=93 // pred_fallthru
                _
              // Predicated region
              $region117: #{tpu_custom_call.1} parent=93 // pred_check
                _
              $region118: #{tpu_custom_call.1} parent=93 // pred_check_branch
                %477 = sbr.rel target = $region120
              $region119: #{tpu_custom_call.1} parent=93 // pred_region
                _
              $region120: #{tpu_custom_call.1} parent=93 // pred_fallthru
                _
            $region94: #{tpu_custom_call.1} parent=89 // pred_fallthru
              _
            // Predicated region
            $region95: #{tpu_custom_call.1} parent=89 // pred_check
              _
            $region96: #{tpu_custom_call.1} parent=89 // pred_check_branch
              %439 = sbr.rel target = $region98
            $region97: #{tpu_custom_call.1} parent=89 // pred_region
              %s441 = ssub.s32 256, 1
              loop: start=0, step=1, limit=1
              $region99: #{tpu_custom_call.1} parent=97 // loop_pre_header
                _
              $region100: #{tpu_custom_call.1} parent=97 // loop_header
                %s443 = sphi 0, %s447
                %p444 = scmp.ge.s32.totalorder %s443, 1
                %s448 = sphi %s433, %s433
                %s449 = sphi %s431, %s431
              $region101: #{tpu_custom_call.1} parent=97 // loop_header_branch
                %446 = sbr.rel (%p444) target = $region105
              $region102: #{tpu_custom_call.1} parent=97 // loop_body
                %v450 = vld [vmem:[%s448] sm:%s441]
                %451 = vst [vmem:[%s449] sm:%s441] %v450
                %v452 = vld [vmem:[%s448 + $0x10] sm:%s441]
                %453 = vst [vmem:[%s449 + $0x8] sm:%s441] %v452
                %v454 = vld [vmem:[%s448 + $0x20] sm:%s441]
                %455 = vst [vmem:[%s449 + $0x10] sm:%s441] %v454
                %v456 = vld [vmem:[%s448 + $0x30] sm:%s441]
                %457 = vst [vmem:[%s449 + $0x18] sm:%s441] %v456
              $region103: #{tpu_custom_call.1} parent=97 // loop_footer
                %s447 = sadd.s32 1, %s443
              $region104: #{tpu_custom_call.1} parent=97 // loop_footer_branch
                %442 = sbr.rel target = $region100
              $region105: #{tpu_custom_call.1} parent=97 // loop_exit
                _
            $region98: #{tpu_custom_call.1} parent=89 // pred_fallthru
              _
          $region90: #{tpu_custom_call.1} parent=85 // pred_fallthru
            _
          %478 = vnop
        $region86: #{tpu_custom_call.1} parent=39 // pred_fallthru
          _
      $region40: #{tpu_custom_call.1} parent=5 // pred_fallthru
        _
      %p479 = scmp.le.s32.totalorder 1, %s25
      %p480 = scmp.lt.s32.totalorder %s25, 3
      %p481 = pnand %p479, %p480
      %p482 = pneg %p481
      // Predicated region
      $region121: #{tpu_custom_call.1} parent=5 // pred_check
        _
      $region122: #{tpu_custom_call.1} parent=5 // pred_check_branch
        %484 = sbr.rel (%p481) target = $region124
      $region123: #{tpu_custom_call.1} parent=5 // pred_region
        %s485 = ssub.s32 %s25, 1
        %s486 = sand.u32 %s78, 1
        %s487 = sand.u32 %s78, 1
        %s488 = smul.addr %s487, 32
        %s489 = scalar_lea.vmem [#allocation3], %s488
        // Predicated region
        $region125: #{tpu_custom_call.1} parent=123 // pred_check
          %p490 = pneg %p91
        $region126: #{tpu_custom_call.1} parent=123 // pred_check_branch
          %492 = sbr.rel (%p490) target = $region128
        $region127: #{tpu_custom_call.1} parent=123 // pred_region
          _
        $region128: #{tpu_custom_call.1} parent=123 // pred_fallthru
          _
        %s493 = sand.u32 %s104, 1
        %s494 = sand.u32 %s104, 1
        %s495 = smul.addr %s494, 32
        %s496 = scalar_lea.vmem [#allocation4], %s495
        // Predicated region
        $region129: #{tpu_custom_call.1} parent=123 // pred_check
          %p497 = pneg %p117
        $region130: #{tpu_custom_call.1} parent=123 // pred_check_branch
          %499 = sbr.rel (%p497) target = $region132
        $region131: #{tpu_custom_call.1} parent=123 // pred_region
          _
        $region132: #{tpu_custom_call.1} parent=123 // pred_fallthru
          _
        %p500 = scmp.lt.s32.totalorder %s35, 0
        %s501 = scalar_select %p500, %s35, 0
        %p502 = scmp.lt.s32.totalorder %s34, 1
        %s503 = scalar_select %p502, %s34, 1
        %s504 = smul.addr %s501, 2
        %s505 = sadd.s32 %s503, %s504
        %s506 = smul.addr %s505, 8
        %s507 = scalar_lea.vmem %s0, %s506
        %p508 = pneg %p65
        %p509 = pneg %p62
        %s510 = sand.u32 %s78, 1
        %s511 = sand.u32 %s78, 1
        %s512 = smul.addr %s511, 32
        %s513 = scalar_lea.vmem [#allocation3], %s512
        %p514 = pneg %p91
        %p515 = pneg %p88
        %s516 = sand.u32 %s104, 1
        %s517 = sand.u32 %s104, 1
        %s518 = smul.addr %s517, 32
        %s519 = scalar_lea.vmem [#allocation4], %s518
        %p520 = pneg %p117
        %p521 = pneg %p114
        %p522 = pneg %p138
        %p523 = pneg %p135
        %p524 = pneg %p159
        %p525 = pneg %p156
        %p526 = pneg %p180
        %p527 = pneg %p177
        %p528 = pneg %p201
        %p529 = pneg %p198
        %p530 = pneg %p222
        %p531 = pneg %p219
        %p532 = pneg %p243
        %p533 = pneg %p240
        %p534 = pneg %p271
        %p535 = pneg %p268
        %s536 = sand.u32 %s258, 1
        %s537 = scalar_lea.sflag [#allocation6], %s536
        %s538 = sand.u32 %s258, 1
        %s539 = scalar_lea.vmem [#allocation5], %s538
        %p540 = pneg %p297
        %p541 = pneg %p294
        %s542 = sand.u32 %s30, 1
        %s543 = scalar_lea.sflag [#allocation8], %s542
        %s544 = sand.u32 %s284, 1
        %s545 = smul.addr %s544, 32
        %s546 = scalar_lea.vmem [#allocation7], %s545
        %p547 = pneg %p323
        %p548 = pneg %p320
        %s549 = sand.u32 %s30, 1
        %s550 = scalar_lea.sflag [#allocation8], %s549
        %s551 = sand.u32 %s310, 1
        %s552 = smul.addr %s551, 32
        %s553 = scalar_lea.vmem [#allocation9], %s552
        %p554 = scmp.lt.s32.totalorder %s35, 0
        %s555 = scalar_select %p554, %s35, 0
        %p556 = scmp.lt.s32.totalorder %s34, 1
        %s557 = scalar_select %p556, %s34, 1
        %s558 = smul.addr %s555, 2
        %s559 = sadd.s32 %s557, %s558
        %s560 = smul.addr %s559, 8
        %s561 = scalar_lea.vmem %s0, %s560
        %p562 = scmp.eq.s32.totalorder %s35, 0
        // Predicated region
        $region133: #{tpu_custom_call.1} parent=123 // pred_check
          %p563 = pneg %p562
        $region134: #{tpu_custom_call.1} parent=123 // pred_check_branch
          %565 = sbr.rel (%p563) target = $region136
        $region135: #{tpu_custom_call.1} parent=123 // pred_region
          %v566 = vld [vmem:[%s489] sm:$0xff]
          %v567 = vld [vmem:[%s489 + $0x8] sm:$0xff]
          %v568 = vld [vmem:[%s489 + $0x10] sm:$0xff]
          %v569 = vld [vmem:[%s489 + $0x18] sm:$0xff]
          %570 = vst [vmem:[%s546] sm:$0xff] %v566
          %571 = vst [vmem:[%s546 + $0x8] sm:$0xff] %v567
          %572 = vst [vmem:[%s546 + $0x10] sm:$0xff] %v568
          %573 = vst [vmem:[%s546 + $0x18] sm:$0xff] %v569
          %v574 = vld [vmem:[%s496] sm:$0xff]
          %v575 = vld [vmem:[%s496 + $0x8] sm:$0xff]
          %v576 = vld [vmem:[%s496 + $0x10] sm:$0xff]
          %v577 = vld [vmem:[%s496 + $0x18] sm:$0xff]
          %578 = vst [vmem:[%s553] sm:$0xff] %v574
          %579 = vst [vmem:[%s553 + $0x8] sm:$0xff] %v575
          %580 = vst [vmem:[%s553 + $0x10] sm:$0xff] %v576
          %581 = vst [vmem:[%s553 + $0x18] sm:$0xff] %v577
        $region136: #{tpu_custom_call.1} parent=123 // pred_fallthru
          _
        %v582 = vld [vmem:[%s546] sm:$0xff]
        %v583 = vld [vmem:[%s546 + $0x8] sm:$0xff]
        %v584 = vld [vmem:[%s546 + $0x10] sm:$0xff]
        %v585 = vld [vmem:[%s546 + $0x18] sm:$0xff]
        %v586 = vld [vmem:[%s553] sm:$0xff]
        %v587 = vld [vmem:[%s553 + $0x8] sm:$0xff]
        %v588 = vld [vmem:[%s553 + $0x10] sm:$0xff]
        %v589 = vld [vmem:[%s553 + $0x18] sm:$0xff]
        %v590 = vld [vmem:[%s3] sm:$0xff]
        %v591 = vld [vmem:[%s3 + $0x8] sm:$0xff]
        %v592 = vld [vmem:[%s3 + $0x10] sm:$0xff]
        %v593 = vld [vmem:[%s3 + $0x18] sm:$0xff]
        %v594 = vld [vmem:[%s3 + $0x20] sm:$0xff]
        %v595 = vld [vmem:[%s3 + $0x28] sm:$0xff]
        %v596 = vld [vmem:[%s3 + $0x30] sm:$0xff]
        %v597 = vld [vmem:[%s3 + $0x38] sm:$0xff]
        %v598 = vld [vmem:[%s3 + $0x40] sm:$0xff]
        %v599 = vld [vmem:[%s3 + $0x48] sm:$0xff]
        %v600 = vld [vmem:[%s3 + $0x50] sm:$0xff]
        %v601 = vld [vmem:[%s3 + $0x58] sm:$0xff]
        %v602 = vld [vmem:[%s3 + $0x60] sm:$0xff]
        %v603 = vld [vmem:[%s3 + $0x68] sm:$0xff]
        %v604 = vld [vmem:[%s3 + $0x70] sm:$0xff]
        %v605 = vld [vmem:[%s3 + $0x78] sm:$0xff]
        %v606 = vld [vmem:[%s4] sm:$0xff]
        %v607 = vld [vmem:[%s4 + $0x8] sm:$0xff]
        %v608 = vld [vmem:[%s4 + $0x10] sm:$0xff]
        %v609 = vld [vmem:[%s4 + $0x18] sm:$0xff]
        %v610 = vld [vmem:[%s4 + $0x20] sm:$0xff]
        %v611 = vld [vmem:[%s4 + $0x28] sm:$0xff]
        %v612 = vld [vmem:[%s4 + $0x30] sm:$0xff]
        %v613 = vld [vmem:[%s4 + $0x38] sm:$0xff]
        %v614 = vld [vmem:[%s4 + $0x40] sm:$0xff]
        %v615 = vld [vmem:[%s4 + $0x48] sm:$0xff]
        %v616 = vld [vmem:[%s4 + $0x50] sm:$0xff]
        %v617 = vld [vmem:[%s4 + $0x58] sm:$0xff]
        %v618 = vld [vmem:[%s4 + $0x60] sm:$0xff]
        %v619 = vld [vmem:[%s4 + $0x68] sm:$0xff]
        %v620 = vld [vmem:[%s4 + $0x70] sm:$0xff]
        %v621 = vld [vmem:[%s4 + $0x78] sm:$0xff]
        %v622 = vld [vmem:[%s561] sm:$0xff]
        %vm623 = vcmask 261120
        %v625 = vsel %vm623, %v606, 0
        %v628 = vsel %vm623, %v607, 0
        %v631 = vsel %vm623, %v608, 0
        %v634 = vsel %vm623, %v609, 0
        %v637 = vsel %vm623, %v610, 0
        %v640 = vsel %vm623, %v611, 0
        %v643 = vsel %vm623, %v612, 0
        %v646 = vsel %vm623, %v613, 0
        %v649 = vsel %vm623, %v614, 0
        %v652 = vsel %vm623, %v615, 0
        %v655 = vsel %vm623, %v616, 0
        %v658 = vsel %vm623, %v617, 0
        %v661 = vsel %vm623, %v618, 0
        %v664 = vsel %vm623, %v619, 0
        %v667 = vsel %vm623, %v620, 0
        %v670 = vsel %vm623, %v621, 0
        %672 = vmatprep.subr.mxu0 0.0
        %673 = vmatpush1.msra.mxu0 0.0
        %674 = vmatprep.subr.mxu0 0.0
        %675 = vmatpush1.msra.mxu0 0.0
        %676 = vmatprep.subr.mxu0 0.0
        %677 = vmatpush1.msra.mxu0 0.0
        %678 = vmatprep.subr.mxu0 0.0
        %679 = vmatpush1.msra.mxu0 0.0
        %680 = vmatprep.subr.mxu0 0.0
        %681 = vmatpush1.msra.mxu0 0.0
        %682 = vmatprep.subr.mxu0 0.0
        %683 = vmatpush1.msra.mxu0 0.0
        %684 = vmatprep.subr.mxu0 0.0
        %685 = vmatpush1.msra.mxu0 0.0
        %686 = vmatprep.subr.mxu0 0.0
        %687 = vmatpush1.msra.mxu0 0.0
        %688 = vmatprep.subr.mxu0 0.0
        %689 = vmatpush1.msra.mxu0 0.0
        %690 = vmatprep.subr.mxu0 0.0
        %691 = vmatpush1.msra.mxu0 0.0
        %692 = vmatprep.subr.mxu0 0.0
        %693 = vmatpush1.msra.mxu0 0.0
        %694 = vmatprep.subr.mxu0 0.0
        %695 = vmatpush1.msra.mxu0 0.0
        %696 = vmatprep.subr.mxu0 0.0
        %697 = vmatpush1.msra.mxu0 %v585
        %698 = vmatprep.subr.mxu0 0.0
        %699 = vmatpush1.msra.mxu0 %v584
        %700 = vmatprep.subr.mxu0 0.0
        %701 = vmatpush1.msra.mxu0 %v583
        %702 = vmatprep.subr.mxu0 0.0
        %703 = vmatpush1.msra.mxu0 %v582
        %704 = vmatprep.subr.mxu0 0.0
        %705 = vmatpush2.msra.mxu0 0.0
        %706 = vmatprep.subr.mxu0 0.0
        %707 = vmatpush2.msra.mxu0 0.0
        %708 = vmatprep.subr.mxu0 0.0
        %709 = vmatpush2.msra.mxu0 0.0
        %710 = vmatprep.subr.mxu0 0.0
        %711 = vmatpush2.msra.mxu0 0.0
        %712 = vmatprep.subr.mxu0 0.0
        %713 = vmatpush2.msra.mxu0 0.0
        %714 = vmatprep.subr.mxu0 0.0
        %715 = vmatpush2.msra.mxu0 0.0
        %716 = vmatprep.subr.mxu0 0.0
        %717 = vmatpush2.msra.mxu0 0.0
        %718 = vmatprep.subr.mxu0 0.0
        %719 = vmatpush2.msra.mxu0 0.0
        %720 = vmatprep.subr.mxu0 0.0
        %721 = vmatpush2.msra.mxu0 0.0
        %722 = vmatprep.subr.mxu0 0.0
        %723 = vmatpush2.msra.mxu0 0.0
        %724 = vmatprep.subr.mxu0 0.0
        %725 = vmatpush2.msra.mxu0 0.0
        %726 = vmatprep.subr.mxu0 0.0
        %727 = vmatpush2.msra.mxu0 0.0
        %728 = vmatprep.subr.mxu0 0.0
        %729 = vmatpush2.msra.mxu0 0.0
        %730 = vmatprep.subr.mxu0 0.0
        %731 = vmatpush2.msra.mxu0 0.0
        %732 = vmatprep.subr.mxu0 0.0
        %733 = vmatpush2.msra.mxu0 0.0
        %734 = vmatprep.subr.mxu0 0.0
        %735 = vmatpush2.msra.mxu0 0.0
        %736 = vmatprep.mubr.f32.mxu0 0.0
        %737 = vmatmul.mubr.f32.gmra.mxu0 %v625
        %v738 = vpop.f32.mrf.mxu0
        %v739 = vadd.f32 0.0, %v738
        %v740 = vpop.f32.mrf.mxu0
        %741 = vmatprep.mubr.f32.mxu0 0.0
        %742 = vmatmul.mubr.f32.gmra.mxu0 %v628
        %v743 = vpop.f32.mrf.mxu0
        %v744 = vadd.f32 0.0, %v743
        %v745 = vpop.f32.mrf.mxu0
        %746 = vmatprep.mubr.f32.mxu0 0.0
        %747 = vmatmul.mubr.f32.gmra.mxu0 %v631
        %v748 = vpop.f32.mrf.mxu0
        %v749 = vadd.f32 0.0, %v748
        %v750 = vpop.f32.mrf.mxu0
        %751 = vmatprep.mubr.f32.mxu0 0.0
        %752 = vmatmul.mubr.f32.gmra.mxu0 %v634
        %v753 = vpop.f32.mrf.mxu0
        %v754 = vadd.f32 0.0, %v753
        %v755 = vpop.f32.mrf.mxu0
        %756 = vmatprep.mubr.f32.mxu0 0.0
        %757 = vmatmul.mubr.f32.gmra.mxu0 %v637
        %v758 = vpop.f32.mrf.mxu0
        %v759 = vadd.f32 0.0, %v758
        %v760 = vpop.f32.mrf.mxu0
        %761 = vmatprep.mubr.f32.mxu0 0.0
        %762 = vmatmul.mubr.f32.gmra.mxu0 %v640
        %v763 = vpop.f32.mrf.mxu0
        %v764 = vadd.f32 0.0, %v763
        %v765 = vpop.f32.mrf.mxu0
        %766 = vmatprep.mubr.f32.mxu0 0.0
        %767 = vmatmul.mubr.f32.gmra.mxu0 %v643
        %v768 = vpop.f32.mrf.mxu0
        %v769 = vadd.f32 0.0, %v768
        %v770 = vpop.f32.mrf.mxu0
        %771 = vmatprep.mubr.f32.mxu0 0.0
        %772 = vmatmul.mubr.f32.gmra.mxu0 %v646
        %v773 = vpop.f32.mrf.mxu0
        %v774 = vadd.f32 0.0, %v773
        %v775 = vpop.f32.mrf.mxu0
        %776 = vmatprep.mubr.f32.mxu0 0.0
        %777 = vmatmul.mubr.f32.gmra.mxu0 %v649
        %v778 = vpop.f32.mrf.mxu0
        %v779 = vadd.f32 0.0, %v778
        %v780 = vpop.f32.mrf.mxu0
        %781 = vmatprep.mubr.f32.mxu0 0.0
        %782 = vmatmul.mubr.f32.gmra.mxu0 %v652
        %v783 = vpop.f32.mrf.mxu0
        %v784 = vadd.f32 0.0, %v783
        %v785 = vpop.f32.mrf.mxu0
        %786 = vmatprep.mubr.f32.mxu0 0.0
        %787 = vmatmul.mubr.f32.gmra.mxu0 %v655
        %v788 = vpop.f32.mrf.mxu0
        %v789 = vadd.f32 0.0, %v788
        %v790 = vpop.f32.mrf.mxu0
        %791 = vmatprep.mubr.f32.mxu0 0.0
        %792 = vmatmul.mubr.f32.gmra.mxu0 %v658
        %v793 = vpop.f32.mrf.mxu0
        %v794 = vadd.f32 0.0, %v793
        %v795 = vpop.f32.mrf.mxu0
        %796 = vmatprep.mubr.f32.mxu0 0.0
        %797 = vmatmul.mubr.f32.gmra.mxu0 %v661
        %v798 = vpop.f32.mrf.mxu0
        %v799 = vadd.f32 0.0, %v798
        %v800 = vpop.f32.mrf.mxu0
        %801 = vmatprep.mubr.f32.mxu0 0.0
        %802 = vmatmul.mubr.f32.gmra.mxu0 %v664
        %v803 = vpop.f32.mrf.mxu0
        %v804 = vadd.f32 0.0, %v803
        %v805 = vpop.f32.mrf.mxu0
        %806 = vmatprep.mubr.f32.mxu0 0.0
        %807 = vmatmul.mubr.f32.gmra.mxu0 %v667
        %v808 = vpop.f32.mrf.mxu0
        %v809 = vadd.f32 0.0, %v808
        %v810 = vpop.f32.mrf.mxu0
        %811 = vmatprep.mubr.f32.mxu0 0.0
        %812 = vmatmul.mubr.f32.gmra.mxu0 %v670
        %v813 = vpop.f32.mrf.mxu0
        %v814 = vadd.f32 0.0, %v813
        %v815 = vpop.f32.mrf.mxu0
        %816 = vdwg.mxu0
        %vm817 = vcmask 64512
        %v819 = vsel %vm817, %v590, 0
        %v822 = vsel %vm817, %v591, 0
        %v825 = vsel %vm817, %v592, 0
        %v828 = vsel %vm817, %v593, 0
        %v831 = vsel %vm817, %v594, 0
        %v834 = vsel %vm817, %v595, 0
        %v837 = vsel %vm817, %v596, 0
        %v840 = vsel %vm817, %v597, 0
        %v843 = vsel %vm817, %v598, 0
        %v846 = vsel %vm817, %v599, 0
        %v849 = vsel %vm817, %v600, 0
        %v852 = vsel %vm817, %v601, 0
        %v855 = vsel %vm817, %v602, 0
        %v858 = vsel %vm817, %v603, 0
        %v861 = vsel %vm817, %v604, 0
        %v864 = vsel %vm817, %v605, 0
        %866 = vmatprep.subr.mxu0 0.0
        %867 = vmatpush1.msra.mxu0 0.0
        %868 = vmatprep.subr.mxu0 0.0
        %869 = vmatpush1.msra.mxu0 0.0
        %870 = vmatprep.subr.mxu0 0.0
        %871 = vmatpush1.msra.mxu0 0.0
        %872 = vmatprep.subr.mxu0 0.0
        %873 = vmatpush1.msra.mxu0 0.0
        %874 = vmatprep.subr.mxu0 0.0
        %875 = vmatpush1.msra.mxu0 0.0
        %876 = vmatprep.subr.mxu0 0.0
        %877 = vmatpush1.msra.mxu0 0.0
        %878 = vmatprep.subr.mxu0 0.0
        %879 = vmatpush1.msra.mxu0 0.0
        %880 = vmatprep.subr.mxu0 0.0
        %881 = vmatpush1.msra.mxu0 0.0
        %882 = vmatprep.subr.mxu0 0.0
        %883 = vmatpush1.msra.mxu0 0.0
        %884 = vmatprep.subr.mxu0 0.0
        %885 = vmatpush1.msra.mxu0 0.0
        %886 = vmatprep.subr.mxu0 0.0
        %887 = vmatpush1.msra.mxu0 0.0
        %888 = vmatprep.subr.mxu0 0.0
        %889 = vmatpush1.msra.mxu0 0.0
        %890 = vmatprep.subr.mxu0 0.0
        %891 = vmatpush1.msra.mxu0 0.0
        %892 = vmatprep.subr.mxu0 0.0
        %893 = vmatpush1.msra.mxu0 0.0
        %894 = vmatprep.subr.mxu0 0.0
        %895 = vmatpush1.msra.mxu0 0.0
        %896 = vmatprep.subr.mxu0 0.0
        %897 = vmatpush1.msra.mxu0 %v622
        %898 = vmatprep.subr.mxu0 0.0
        %899 = vmatpush2.msra.mxu0 0.0
        %900 = vmatprep.subr.mxu0 0.0
        %901 = vmatpush2.msra.mxu0 0.0
        %902 = vmatprep.subr.mxu0 0.0
        %903 = vmatpush2.msra.mxu0 0.0
        %904 = vmatprep.subr.mxu0 0.0
        %905 = vmatpush2.msra.mxu0 0.0
        %906 = vmatprep.subr.mxu0 0.0
        %907 = vmatpush2.msra.mxu0 0.0
        %908 = vmatprep.subr.mxu0 0.0
        %909 = vmatpush2.msra.mxu0 0.0
        %910 = vmatprep.subr.mxu0 0.0
        %911 = vmatpush2.msra.mxu0 0.0
        %912 = vmatprep.subr.mxu0 0.0
        %913 = vmatpush2.msra.mxu0 0.0
        %914 = vmatprep.subr.mxu0 0.0
        %915 = vmatpush2.msra.mxu0 0.0
        %916 = vmatprep.subr.mxu0 0.0
        %917 = vmatpush2.msra.mxu0 0.0
        %918 = vmatprep.subr.mxu0 0.0
        %919 = vmatpush2.msra.mxu0 0.0
        %920 = vmatprep.subr.mxu0 0.0
        %921 = vmatpush2.msra.mxu0 0.0
        %922 = vmatprep.subr.mxu0 0.0
        %923 = vmatpush2.msra.mxu0 0.0
        %924 = vmatprep.subr.mxu0 0.0
        %925 = vmatpush2.msra.mxu0 0.0
        %926 = vmatprep.subr.mxu0 0.0
        %927 = vmatpush2.msra.mxu0 0.0
        %928 = vmatprep.subr.mxu0 0.0
        %929 = vmatpush2.msra.mxu0 0.0
        %930 = vmatprep.mubr.f32.mxu0 0.0
        %931 = vmatmul.mubr.f32.gmra.mxu0 %v819
        %v932 = vpop.f32.mrf.mxu0
        %v933 = vadd.f32 %v739, %v932
        %v934 = vpop.f32.mrf.mxu0
        %935 = vmatprep.mubr.f32.mxu0 0.0
        %936 = vmatmul.mubr.f32.gmra.mxu0 %v822
        %v937 = vpop.f32.mrf.mxu0
        %v938 = vadd.f32 %v744, %v937
        %v939 = vpop.f32.mrf.mxu0
        %940 = vmatprep.mubr.f32.mxu0 0.0
        %941 = vmatmul.mubr.f32.gmra.mxu0 %v825
        %v942 = vpop.f32.mrf.mxu0
        %v943 = vadd.f32 %v749, %v942
        %v944 = vpop.f32.mrf.mxu0
        %945 = vmatprep.mubr.f32.mxu0 0.0
        %946 = vmatmul.mubr.f32.gmra.mxu0 %v828
        %v947 = vpop.f32.mrf.mxu0
        %v948 = vadd.f32 %v754, %v947
        %v949 = vpop.f32.mrf.mxu0
        %950 = vmatprep.mubr.f32.mxu0 0.0
        %951 = vmatmul.mubr.f32.gmra.mxu0 %v831
        %v952 = vpop.f32.mrf.mxu0
        %v953 = vadd.f32 %v759, %v952
        %v954 = vpop.f32.mrf.mxu0
        %955 = vmatprep.mubr.f32.mxu0 0.0
        %956 = vmatmul.mubr.f32.gmra.mxu0 %v834
        %v957 = vpop.f32.mrf.mxu0
        %v958 = vadd.f32 %v764, %v957
        %v959 = vpop.f32.mrf.mxu0
        %960 = vmatprep.mubr.f32.mxu0 0.0
        %961 = vmatmul.mubr.f32.gmra.mxu0 %v837
        %v962 = vpop.f32.mrf.mxu0
        %v963 = vadd.f32 %v769, %v962
        %v964 = vpop.f32.mrf.mxu0
        %965 = vmatprep.mubr.f32.mxu0 0.0
        %966 = vmatmul.mubr.f32.gmra.mxu0 %v840
        %v967 = vpop.f32.mrf.mxu0
        %v968 = vadd.f32 %v774, %v967
        %v969 = vpop.f32.mrf.mxu0
        %970 = vmatprep.mubr.f32.mxu0 0.0
        %971 = vmatmul.mubr.f32.gmra.mxu0 %v843
        %v972 = vpop.f32.mrf.mxu0
        %v973 = vadd.f32 %v779, %v972
        %v974 = vpop.f32.mrf.mxu0
        %975 = vmatprep.mubr.f32.mxu0 0.0
        %976 = vmatmul.mubr.f32.gmra.mxu0 %v846
        %v977 = vpop.f32.mrf.mxu0
        %v978 = vadd.f32 %v784, %v977
        %v979 = vpop.f32.mrf.mxu0
        %980 = vmatprep.mubr.f32.mxu0 0.0
        %981 = vmatmul.mubr.f32.gmra.mxu0 %v849
        %v982 = vpop.f32.mrf.mxu0
        %v983 = vadd.f32 %v789, %v982
        %v984 = vpop.f32.mrf.mxu0
        %985 = vmatprep.mubr.f32.mxu0 0.0
        %986 = vmatmul.mubr.f32.gmra.mxu0 %v852
        %v987 = vpop.f32.mrf.mxu0
        %v988 = vadd.f32 %v794, %v987
        %v989 = vpop.f32.mrf.mxu0
        %990 = vmatprep.mubr.f32.mxu0 0.0
        %991 = vmatmul.mubr.f32.gmra.mxu0 %v855
        %v992 = vpop.f32.mrf.mxu0
        %v993 = vadd.f32 %v799, %v992
        %v994 = vpop.f32.mrf.mxu0
        %995 = vmatprep.mubr.f32.mxu0 0.0
        %996 = vmatmul.mubr.f32.gmra.mxu0 %v858
        %v997 = vpop.f32.mrf.mxu0
        %v998 = vadd.f32 %v804, %v997
        %v999 = vpop.f32.mrf.mxu0
        %1000 = vmatprep.mubr.f32.mxu0 0.0
        %1001 = vmatmul.mubr.f32.gmra.mxu0 %v861
        %v1002 = vpop.f32.mrf.mxu0
        %v1003 = vadd.f32 %v809, %v1002
        %v1004 = vpop.f32.mrf.mxu0
        %1005 = vmatprep.mubr.f32.mxu0 0.0
        %1006 = vmatmul.mubr.f32.gmra.mxu0 %v864
        %v1007 = vpop.f32.mrf.mxu0
        %v1008 = vadd.f32 %v814, %v1007
        %v1009 = vpop.f32.mrf.mxu0
        %1010 = vdwg.mxu0
        %v1011 = vld [vmem:[%s5] sm:$0xff]
        %v1012 = vld [vmem:[%s5 + $0x8] sm:$0xff]
        %v1013 = vld [vmem:[%s5 + $0x10] sm:$0xff]
        %v1014 = vld [vmem:[%s5 + $0x18] sm:$0xff]
        %v1015 = vld [vmem:[%s5 + $0x20] sm:$0xff]
        %v1016 = vld [vmem:[%s5 + $0x28] sm:$0xff]
        %v1017 = vld [vmem:[%s5 + $0x30] sm:$0xff]
        %v1018 = vld [vmem:[%s5 + $0x38] sm:$0xff]
        %v1019 = vld [vmem:[%s5 + $0x40] sm:$0xff]
        %v1020 = vld [vmem:[%s5 + $0x48] sm:$0xff]
        %v1021 = vld [vmem:[%s5 + $0x50] sm:$0xff]
        %v1022 = vld [vmem:[%s5 + $0x58] sm:$0xff]
        %v1023 = vld [vmem:[%s5 + $0x60] sm:$0xff]
        %v1024 = vld [vmem:[%s5 + $0x68] sm:$0xff]
        %v1025 = vld [vmem:[%s5 + $0x70] sm:$0xff]
        %v1026 = vld [vmem:[%s5 + $0x78] sm:$0xff]
        %1028 = vset.pattern.permute.xlu0 0
        %1029 = vperm.xlu0 %1028, %v1011
        %v1030 = vpop.permute.xlu0 %1029
        %1033 = vset.pattern.permute.xlu0 0
        %1034 = vperm.xlu0 %1033, %v1012
        %v1035 = vpop.permute.xlu0 %1034
        %1038 = vset.pattern.permute.xlu0 0
        %1039 = vperm.xlu0 %1038, %v1013
        %v1040 = vpop.permute.xlu0 %1039
        %1043 = vset.pattern.permute.xlu0 0
        %1044 = vperm.xlu0 %1043, %v1014
        %v1045 = vpop.permute.xlu0 %1044
        %1048 = vset.pattern.permute.xlu0 0
        %1049 = vperm.xlu0 %1048, %v1015
        %v1050 = vpop.permute.xlu0 %1049
        %1053 = vset.pattern.permute.xlu0 0
        %1054 = vperm.xlu0 %1053, %v1016
        %v1055 = vpop.permute.xlu0 %1054
        %1058 = vset.pattern.permute.xlu0 0
        %1059 = vperm.xlu0 %1058, %v1017
        %v1060 = vpop.permute.xlu0 %1059
        %1063 = vset.pattern.permute.xlu0 0
        %1064 = vperm.xlu0 %1063, %v1018
        %v1065 = vpop.permute.xlu0 %1064
        %1068 = vset.pattern.permute.xlu0 0
        %1069 = vperm.xlu0 %1068, %v1019
        %v1070 = vpop.permute.xlu0 %1069
        %1073 = vset.pattern.permute.xlu0 0
        %1074 = vperm.xlu0 %1073, %v1020
        %v1075 = vpop.permute.xlu0 %1074
        %1078 = vset.pattern.permute.xlu0 0
        %1079 = vperm.xlu0 %1078, %v1021
        %v1080 = vpop.permute.xlu0 %1079
        %1083 = vset.pattern.permute.xlu0 0
        %1084 = vperm.xlu0 %1083, %v1022
        %v1085 = vpop.permute.xlu0 %1084
        %1088 = vset.pattern.permute.xlu0 0
        %1089 = vperm.xlu0 %1088, %v1023
        %v1090 = vpop.permute.xlu0 %1089
        %1093 = vset.pattern.permute.xlu0 0
        %1094 = vperm.xlu0 %1093, %v1024
        %v1095 = vpop.permute.xlu0 %1094
        %1098 = vset.pattern.permute.xlu0 0
        %1099 = vperm.xlu0 %1098, %v1025
        %v1100 = vpop.permute.xlu0 %1099
        %1103 = vset.pattern.permute.xlu0 0
        %1104 = vperm.xlu0 %1103, %v1026
        %v1105 = vpop.permute.xlu0 %1104
        %v1107 = vadd.f32 %v933, %v1030
        %v1108 = vadd.f32 %v938, %v1035
        %v1109 = vadd.f32 %v943, %v1040
        %v1110 = vadd.f32 %v948, %v1045
        %v1111 = vadd.f32 %v953, %v1050
        %v1112 = vadd.f32 %v958, %v1055
        %v1113 = vadd.f32 %v963, %v1060
        %v1114 = vadd.f32 %v968, %v1065
        %v1115 = vadd.f32 %v973, %v1070
        %v1116 = vadd.f32 %v978, %v1075
        %v1117 = vadd.f32 %v983, %v1080
        %v1118 = vadd.f32 %v988, %v1085
        %v1119 = vadd.f32 %v993, %v1090
        %v1120 = vadd.f32 %v998, %v1095
        %v1121 = vadd.f32 %v1003, %v1100
        %v1122 = vadd.f32 %v1008, %v1105
        %v1123 = vld [vmem:[%s6] sm:$0xff]
        %v1124 = vld [vmem:[%s6 + $0x8] sm:$0xff]
        %v1125 = vld [vmem:[%s6 + $0x10] sm:$0xff]
        %v1126 = vld [vmem:[%s6 + $0x18] sm:$0xff]
        %v1127 = vld [vmem:[%s6 + $0x20] sm:$0xff]
        %v1128 = vld [vmem:[%s6 + $0x28] sm:$0xff]
        %v1129 = vld [vmem:[%s6 + $0x30] sm:$0xff]
        %v1130 = vld [vmem:[%s6 + $0x38] sm:$0xff]
        %v1131 = vld [vmem:[%s6 + $0x40] sm:$0xff]
        %v1132 = vld [vmem:[%s6 + $0x48] sm:$0xff]
        %v1133 = vld [vmem:[%s6 + $0x50] sm:$0xff]
        %v1134 = vld [vmem:[%s6 + $0x58] sm:$0xff]
        %1136 = vset.pattern.permute.xlu0 0
        %1137 = vperm.xlu0 %1136, %v1123
        %v1138 = vpop.permute.xlu0 %1137
        %1141 = vset.pattern.permute.xlu0 0
        %1142 = vperm.xlu0 %1141, %v1124
        %v1143 = vpop.permute.xlu0 %1142
        %1146 = vset.pattern.permute.xlu0 0
        %1147 = vperm.xlu0 %1146, %v1125
        %v1148 = vpop.permute.xlu0 %1147
        %1151 = vset.pattern.permute.xlu0 0
        %1152 = vperm.xlu0 %1151, %v1126
        %v1153 = vpop.permute.xlu0 %1152
        %v1155 = vmul.f32 %v1138, %v586
        %v1156 = vmul.f32 %v1143, %v587
        %v1157 = vmul.f32 %v1148, %v588
        %v1158 = vmul.f32 %v1153, %v589
        %v1159 = vadd.f32 %v1107, %v1155
        %v1160 = vadd.f32 %v1108, %v1156
        %v1161 = vadd.f32 %v1109, %v1157
        %v1162 = vadd.f32 %v1110, %v1158
        %v1163 = vxor.u32 %v1159, 2147483648
        %v1164 = vxor.u32 %v1160, 2147483648
        %v1165 = vxor.u32 %v1161, 2147483648
        %v1166 = vxor.u32 %v1162, 2147483648
        %v1167 = vmul.f32 %v1163, 1.442695
        %v1168 = vpow.pop %v1167
        %v1169 = vmul.f32 %v1164, 1.442695
        %v1170 = vpow.pop %v1169
        %v1171 = vmul.f32 %v1165, 1.442695
        %v1172 = vpow.pop %v1171
        %v1173 = vmul.f32 %v1166, 1.442695
        %v1174 = vpow.pop %v1173
        %v1175 = vadd.f32 %v1168, 1.0
        %v1176 = vadd.f32 %v1170, 1.0
        %v1177 = vadd.f32 %v1172, 1.0
        %v1178 = vadd.f32 %v1174, 1.0
        %v1179 = vrcp.pop %v1175
        %v1180 = vmul.f32 1.0, %v1179
        %v1181 = vrcp.pop %v1176
        %v1182 = vmul.f32 1.0, %v1181
        %v1183 = vrcp.pop %v1177
        %v1184 = vmul.f32 1.0, %v1183
        %v1185 = vrcp.pop %v1178
        %v1186 = vmul.f32 1.0, %v1185
        %1188 = vset.pattern.permute.xlu0 0
        %1189 = vperm.xlu0 %1188, %v1127
        %v1190 = vpop.permute.xlu0 %1189
        %1193 = vset.pattern.permute.xlu0 0
        %1194 = vperm.xlu0 %1193, %v1128
        %v1195 = vpop.permute.xlu0 %1194
        %1198 = vset.pattern.permute.xlu0 0
        %1199 = vperm.xlu0 %1198, %v1129
        %v1200 = vpop.permute.xlu0 %1199
        %1203 = vset.pattern.permute.xlu0 0
        %1204 = vperm.xlu0 %1203, %v1130
        %v1205 = vpop.permute.xlu0 %1204
        %v1207 = vmul.f32 %v1190, %v586
        %v1208 = vmul.f32 %v1195, %v587
        %v1209 = vmul.f32 %v1200, %v588
        %v1210 = vmul.f32 %v1205, %v589
        %v1211 = vadd.f32 %v1111, %v1207
        %v1212 = vadd.f32 %v1112, %v1208
        %v1213 = vadd.f32 %v1113, %v1209
        %v1214 = vadd.f32 %v1114, %v1210
        %v1215 = vxor.u32 %v1211, 2147483648
        %v1216 = vxor.u32 %v1212, 2147483648
        %v1217 = vxor.u32 %v1213, 2147483648
        %v1218 = vxor.u32 %v1214, 2147483648
        %v1219 = vmul.f32 %v1215, 1.442695
        %v1220 = vpow.pop %v1219
        %v1221 = vmul.f32 %v1216, 1.442695
        %v1222 = vpow.pop %v1221
        %v1223 = vmul.f32 %v1217, 1.442695
        %v1224 = vpow.pop %v1223
        %v1225 = vmul.f32 %v1218, 1.442695
        %v1226 = vpow.pop %v1225
        %v1227 = vadd.f32 %v1220, 1.0
        %v1228 = vadd.f32 %v1222, 1.0
        %v1229 = vadd.f32 %v1224, 1.0
        %v1230 = vadd.f32 %v1226, 1.0
        %v1231 = vrcp.pop %v1227
        %v1232 = vmul.f32 1.0, %v1231
        %v1233 = vrcp.pop %v1228
        %v1234 = vmul.f32 1.0, %v1233
        %v1235 = vrcp.pop %v1229
        %v1236 = vmul.f32 1.0, %v1235
        %v1237 = vrcp.pop %v1230
        %v1238 = vmul.f32 1.0, %v1237
        %v1239 = vtanh.pop %v1115
        %v1240 = vtanh.pop %v1116
        %v1241 = vtanh.pop %v1117
        %v1242 = vtanh.pop %v1118
        %v1243 = vmul.f32 %v1232, %v586
        %v1244 = vmul.f32 %v1234, %v587
        %v1245 = vmul.f32 %v1236, %v588
        %v1246 = vmul.f32 %v1238, %v589
        %v1247 = vmul.f32 %v1180, %v1239
        %v1248 = vmul.f32 %v1182, %v1240
        %v1249 = vmul.f32 %v1184, %v1241
        %v1250 = vmul.f32 %v1186, %v1242
        %v1251 = vadd.f32 %v1243, %v1247
        %v1252 = vadd.f32 %v1244, %v1248
        %v1253 = vadd.f32 %v1245, %v1249
        %v1254 = vadd.f32 %v1246, %v1250
        %1256 = vset.pattern.permute.xlu0 0
        %1257 = vperm.xlu0 %1256, %v1131
        %v1258 = vpop.permute.xlu0 %1257
        %1261 = vset.pattern.permute.xlu0 0
        %1262 = vperm.xlu0 %1261, %v1132
        %v1263 = vpop.permute.xlu0 %1262
        %1266 = vset.pattern.permute.xlu0 0
        %1267 = vperm.xlu0 %1266, %v1133
        %v1268 = vpop.permute.xlu0 %1267
        %1271 = vset.pattern.permute.xlu0 0
        %1272 = vperm.xlu0 %1271, %v1134
        %v1273 = vpop.permute.xlu0 %1272
        %v1275 = vmul.f32 %v1258, %v1251
        %v1276 = vmul.f32 %v1263, %v1252
        %v1277 = vmul.f32 %v1268, %v1253
        %v1278 = vmul.f32 %v1273, %v1254
        %v1279 = vadd.f32 %v1119, %v1275
        %v1280 = vadd.f32 %v1120, %v1276
        %v1281 = vadd.f32 %v1121, %v1277
        %v1282 = vadd.f32 %v1122, %v1278
        %v1283 = vxor.u32 %v1279, 2147483648
        %v1284 = vxor.u32 %v1280, 2147483648
        %v1285 = vxor.u32 %v1281, 2147483648
        %v1286 = vxor.u32 %v1282, 2147483648
        %v1287 = vmul.f32 %v1283, 1.442695
        %v1288 = vpow.pop %v1287
        %v1289 = vmul.f32 %v1284, 1.442695
        %v1290 = vpow.pop %v1289
        %v1291 = vmul.f32 %v1285, 1.442695
        %v1292 = vpow.pop %v1291
        %v1293 = vmul.f32 %v1286, 1.442695
        %v1294 = vpow.pop %v1293
        %v1295 = vadd.f32 %v1288, 1.0
        %v1296 = vadd.f32 %v1290, 1.0
        %v1297 = vadd.f32 %v1292, 1.0
        %v1298 = vadd.f32 %v1294, 1.0
        %v1299 = vrcp.pop %v1295
        %v1300 = vmul.f32 1.0, %v1299
        %v1301 = vrcp.pop %v1296
        %v1302 = vmul.f32 1.0, %v1301
        %v1303 = vrcp.pop %v1297
        %v1304 = vmul.f32 1.0, %v1303
        %v1305 = vrcp.pop %v1298
        %v1306 = vmul.f32 1.0, %v1305
        %v1307 = vtanh.pop %v1251
        %v1308 = vtanh.pop %v1252
        %v1309 = vtanh.pop %v1253
        %v1310 = vtanh.pop %v1254
        %v1311 = vmul.f32 %v1300, %v1307
        %v1312 = vmul.f32 %v1302, %v1308
        %v1313 = vmul.f32 %v1304, %v1309
        %v1314 = vmul.f32 %v1306, %v1310
        %1315 = vst [vmem:[%s553] sm:$0xff] %v1251
        %1316 = vst [vmem:[%s553 + $0x8] sm:$0xff] %v1252
        %1317 = vst [vmem:[%s553 + $0x10] sm:$0xff] %v1253
        %1318 = vst [vmem:[%s553 + $0x18] sm:$0xff] %v1254
        %1319 = vst [vmem:[%s546] sm:$0xff] %v1311
        %1320 = vst [vmem:[%s546 + $0x8] sm:$0xff] %v1312
        %1321 = vst [vmem:[%s546 + $0x10] sm:$0xff] %v1313
        %1322 = vst [vmem:[%s546 + $0x18] sm:$0xff] %v1314
        %v1323 = vld [vmem:[%s7] sm:$0xff]
        %v1324 = vld [vmem:[%s7 + $0x8] sm:$0xff]
        %v1325 = vld [vmem:[%s7 + $0x10] sm:$0xff]
        %v1326 = vld [vmem:[%s7 + $0x18] sm:$0xff]
        %1328 = vset.pattern.permute.xlu0 0
        %1329 = vperm.xlu0 %1328, %v1323
        %v1330 = vpop.permute.xlu0 %1329
        %1333 = vset.pattern.permute.xlu0 0
        %1334 = vperm.xlu0 %1333, %v1324
        %v1335 = vpop.permute.xlu0 %1334
        %1338 = vset.pattern.permute.xlu0 0
        %1339 = vperm.xlu0 %1338, %v1325
        %v1340 = vpop.permute.xlu0 %1339
        %1343 = vset.pattern.permute.xlu0 0
        %1344 = vperm.xlu0 %1343, %v1326
        %v1345 = vpop.permute.xlu0 %1344
        %v1347 = vmul.f32 %v1311, %v1330
        %v1348 = vmul.f32 %v1312, %v1335
        %v1349 = vmul.f32 %v1313, %v1340
        %v1350 = vmul.f32 %v1314, %v1345
        %v1351 = vadd.f32 %v1347, %v1348
        %v1352 = vadd.f32 %v1351, %v1349
        %v1353 = vadd.f32 %v1352, %v1350
        %v1354 = vrot.slane %v1353, 4
        %v1355 = vadd.f32 %v1353, %v1354
        %v1356 = vrot.slane %v1355, 2
        %v1357 = vadd.f32 %v1355, %v1356
        %v1358 = vrot.slane %v1357, 1
        %v1359 = vadd.f32 %v1357, %v1358
        %s1360 = sld [smem:[#allocation2]]
        %v1361 = vstv %s1360
        %v1362 = vadd.f32 %v1359, %v1361
        %1363 = vst [vmem:[%s539] sm:$0x1] %v1362
        %s1364 = sand.u32 %s258, 1
        %s1365 = scalar_lea.sflag [#allocation6], %s1364
        %s1366 = sand.u32 %s258, 1
        %s1367 = scalar_lea.vmem [#allocation5], %s1366
        %s1368 = sand.u32 %s30, 1
        %s1369 = scalar_lea.sflag [#allocation8], %s1368
        %s1370 = sand.u32 %s284, 1
        %s1371 = smul.addr %s1370, 32
        %s1372 = scalar_lea.vmem [#allocation7], %s1371
        %s1373 = sand.u32 %s30, 1
        %s1374 = scalar_lea.sflag [#allocation8], %s1373
        %s1375 = sand.u32 %s310, 1
        %s1376 = smul.addr %s1375, 32
        %s1377 = scalar_lea.vmem [#allocation9], %s1376
        // Predicated region
        $region137: #{tpu_custom_call.1} parent=123 // pred_check
          %p1378 = pneg %p268
        $region138: #{tpu_custom_call.1} parent=123 // pred_check_branch
          %1380 = sbr.rel (%p1378) target = $region140
        $region139: #{tpu_custom_call.1} parent=123 // pred_region
          %s1382 = ssub.s32 16, 16
          %1383 = vsyncadd %s1365, %s1382
          %s1384 = smul.addr %s35, 2
          %s1385 = sadd.s32 %s34, %s1384
          %s1386 = smul.addr %s1385, 16
          %s1387 = scalar_lea.hbm %s9, %s1386
          %s1389 = sshll.u32 %s1367, 4
          %s1390 = int_to_ptr.vmem [resolvable:$true] %s1389
          %1392 = dma.vmem_to_hbm [thread:$0]  %s1390, 16, %s1387, %s1365
        $region140: #{tpu_custom_call.1} parent=123 // pred_fallthru
          _
        // Predicated region
        $region141: #{tpu_custom_call.1} parent=123 // pred_check
          %p1393 = pneg %p294
        $region142: #{tpu_custom_call.1} parent=123 // pred_check_branch
          %1395 = sbr.rel (%p1393) target = $region144
        $region143: #{tpu_custom_call.1} parent=123 // pred_region
          %s1397 = ssub.s32 512, 512
          %1398 = vsyncadd %s1369, %s1397
          %s1399 = smul.addr %s34, 128
          %s1400 = scalar_lea.hbm %s10, %s1399
          %s1401 = sshll.u32 %s1372, 4
          %s1402 = int_to_ptr.vmem [resolvable:$true] %s1401
          %1407 = dma.vmem_to_hbm [thread:$0]  %s1402, 512, %s1400, %s1369, 128, 256, 8
        $region144: #{tpu_custom_call.1} parent=123 // pred_fallthru
          _
        // Predicated region
        $region145: #{tpu_custom_call.1} parent=123 // pred_check
          %p1408 = pneg %p320
        $region146: #{tpu_custom_call.1} parent=123 // pred_check_branch
          %1410 = sbr.rel (%p1408) target = $region148
        $region147: #{tpu_custom_call.1} parent=123 // pred_region
          %s1412 = ssub.s32 512, 512
          %1413 = vsyncadd %s1374, %s1412
          %s1414 = smul.addr %s34, 128
          %s1415 = scalar_lea.hbm %s11, %s1414
          %s1416 = sshll.u32 %s1377, 4
          %s1417 = int_to_ptr.vmem [resolvable:$true] %s1416
          %1422 = dma.vmem_to_hbm [thread:$0]  %s1417, 512, %s1415, %s1374, 128, 256, 8
        $region148: #{tpu_custom_call.1} parent=123 // pred_fallthru
          _
      $region124: #{tpu_custom_call.1} parent=5 // pred_fallthru
        _
      %p1423 = scmp.le.s32.totalorder 2, %s25
      // Predicated region
      $region149: #{tpu_custom_call.1} parent=5 // pred_check
        %p1424 = pneg %p1423
      $region150: #{tpu_custom_call.1} parent=5 // pred_check_branch
        %1426 = sbr.rel (%p1424) target = $region152
      $region151: #{tpu_custom_call.1} parent=5 // pred_region
        %s1427 = ssub.s32 %s25, 2
        // Predicated region
        $region153: #{tpu_custom_call.1} parent=151 // pred_check
          %p1428 = pneg %p274
        $region154: #{tpu_custom_call.1} parent=151 // pred_check_branch
          %1430 = sbr.rel (%p1428) target = $region156
        $region155: #{tpu_custom_call.1} parent=151 // pred_region
          %s1431 = sand.u32 %s259, 1
          %s1432 = scalar_lea.sflag [#allocation6], %s1431
          %s1433 = sand.u32 %s259, 1
          %s1434 = scalar_lea.vmem [#allocation5], %s1433
          %1435 = dma.done %s1432, 16
        $region156: #{tpu_custom_call.1} parent=151 // pred_fallthru
          _
        // Predicated region
        $region157: #{tpu_custom_call.1} parent=151 // pred_check
          %p1436 = pneg %p300
        $region158: #{tpu_custom_call.1} parent=151 // pred_check_branch
          %1438 = sbr.rel (%p1436) target = $region160
        $region159: #{tpu_custom_call.1} parent=151 // pred_region
          %s1439 = sand.u32 %s31, 1
          %s1440 = scalar_lea.sflag [#allocation8], %s1439
          %s1441 = sand.u32 %s285, 1
          %s1442 = smul.addr %s1441, 32
          %s1443 = scalar_lea.vmem [#allocation7], %s1442
          %1444 = dma.done %s1440, 512
        $region160: #{tpu_custom_call.1} parent=151 // pred_fallthru
          _
        // Predicated region
        $region161: #{tpu_custom_call.1} parent=151 // pred_check
          %p1445 = pneg %p326
        $region162: #{tpu_custom_call.1} parent=151 // pred_check_branch
          %1447 = sbr.rel (%p1445) target = $region164
        $region163: #{tpu_custom_call.1} parent=151 // pred_region
          %s1448 = sand.u32 %s31, 1
          %s1449 = scalar_lea.sflag [#allocation8], %s1448
          %s1450 = sand.u32 %s311, 1
          %s1451 = smul.addr %s1450, 32
          %s1452 = scalar_lea.vmem [#allocation9], %s1451
          %1453 = dma.done %s1449, 512
        $region164: #{tpu_custom_call.1} parent=151 // pred_fallthru
          _
      $region152: #{tpu_custom_call.1} parent=5 // pred_fallthru
        _
    $region6: #{tpu_custom_call.1} parent=1 // loop_footer
      %s29 = sadd.s32 1, %s25
    $region7: #{tpu_custom_call.1} parent=1 // loop_footer_branch
      %24 = sbr.rel target = $region3
    $region8: #{tpu_custom_call.1} parent=1 // loop_exit
      _
    %1454 = vsyncpa [#allocation6], 1
    %s1455 = scalar_lea.sflag [#allocation6], 1
    %1456 = vsyncpa %s1455, 1
    %1457 = vsyncpa [#allocation8], 1
    %s1458 = scalar_lea.sflag [#allocation8], 1
    %1459 = vsyncpa %s1458, 1

</llo_original>
